<compile_context>
chip_gen: v7x
topology: tpu7x:2x2x1
jax: 0.10.0
libtpu: 0.0.40
codegen_flags: <defaults>
</compile_context>

<pallas_src>
import jax
import jax.numpy as jnp
from jax.experimental import pallas as pl
from jax.experimental.pallas import tpu as pltpu


# ---------------------------------------------------------------------------
# Kernel
# ---------------------------------------------------------------------------
def _fusion_kernel(g_ref, a_ref, s_ref, wg_ref, wa_ref, ws_ref, b_ref, o_ref):
    # o = relu(g @ Wg + a @ Wa + s @ Ws + b) for one batch tile.
    # The three partial dots implement the [graph, attentive, sector] concat
    # without materializing it.  Accumulate + epilogue in f32, cast at store.
    y = jnp.dot(g_ref[...], wg_ref[...], preferred_element_type=jnp.float32)
    y = y + jnp.dot(a_ref[...], wa_ref[...], preferred_element_type=jnp.float32)
    y = y + jnp.dot(s_ref[...], ws_ref[...], preferred_element_type=jnp.float32)
    y = y + b_ref[...].astype(jnp.float32)
    o_ref[...] = jnp.maximum(y, 0.0).astype(o_ref.dtype)


# ---------------------------------------------------------------------------
# Helpers
# ---------------------------------------------------------------------------
def _pad_lanes(n):
    """Minor (lane) dim as actually stored in HBM tiled layout."""
    return ((n + 127) // 128) * 128


def _xla_fusion(g, a, s, w_g, w_a, w_s, bias, out_dtype):
    """Small-batch bypass: same split-weight math, plain XLA (no pallas_call)."""
    y = (jnp.dot(g, w_g, preferred_element_type=jnp.float32)
         + jnp.dot(a, w_a, preferred_element_type=jnp.float32)
         + jnp.dot(s, w_s, preferred_element_type=jnp.float32)
         + bias.astype(jnp.float32))
    return jnp.maximum(y, 0.0).astype(out_dtype)


# ---------------------------------------------------------------------------
# Public wrapper
# ---------------------------------------------------------------------------
def embedding_fusion(attentive_emb, graph_emb, sector_emb, weight, bias, *,
                     block_rows=4096, xla_bypass_rows=256, force_pallas=False):
    """Pallas implementation of EmbeddingFusion.forward.

    weight: (input_dim, output_dim), rows ordered [graph, attentive, sector]
            (i.e. the transpose of PyTorch's (out, in) layout, rows permuted to
            match the torch concat order).  Porting a torch checkpoint requires
            weight_jax = weight_torch.T with that row ordering.
    bias:   (output_dim,)
    """
    assert block_rows % 8 == 0, "block_rows must be a multiple of 8"

    # squeeze(1) glue, matching the torch module.
    if graph_emb.ndim > 2:
        graph_emb = jnp.squeeze(graph_emb, axis=1)
    if attentive_emb.ndim > 2:
        attentive_emb = jnp.squeeze(attentive_emb, axis=1)

    batch, d_g = graph_emb.shape
    d_a = attentive_emb.shape[-1]
    d_s = sector_emb.shape[-1]
    d_in = d_g + d_a + d_s
    d_out = weight.shape[1]
    assert weight.shape[0] == d_in
    assert attentive_emb.shape[0] == batch and sector_emb.shape[0] == batch

    # Common activation dtype (mixed-dtype inputs are promoted explicitly
    # instead of silently taking graph_emb's dtype).
    act_dtype = jnp.result_type(attentive_emb.dtype, graph_emb.dtype,
                                sector_emb.dtype)
    out_dtype = act_dtype
    g = graph_emb.astype(act_dtype)
    a = attentive_emb.astype(act_dtype)
    s = sector_emb.astype(act_dtype)

    # Split the fusion weight by input chunk (graph rows first -> torch concat
    # order).  Tiny one-time slices, done outside the kernel.
    w_g = weight[:d_g]
    w_a = weight[d_g:d_g + d_a]
    w_s = weight[d_g + d_a:]
    b2 = bias.reshape(1, d_out)

    # Small-batch bypass: the whole op is launch/fixed-DMA dominated below a
    # few hundred rows; a fused XLA op is faster there.
    if batch < xla_bypass_rows and not force_pallas:
        return _xla_fusion(g, a, s, w_g, w_a, w_s, bias, out_dtype)

    # ---- batch tiling ------------------------------------------------------
    # Keep >= 2 grid steps whenever possible so ("parallel",) lets v7x's two
    # TensorCores split the batch; cap the tile at block_rows so per-step DMA
    # is large enough to amortize the ~0.35 us per-step overhead.
    rows = batch
    if rows <= 8:
        tb = rows                       # single full block (block == array dim)
    else:
        n_steps = max(2, pl.cdiv(rows, block_rows))
        tb = pl.cdiv(rows, n_steps)
        tb = ((tb + 7) // 8) * 8        # (8, 128) constraint on 2nd-minor dim
    grid = (pl.cdiv(rows, tb),)

    # ---- cost estimate (real, lane-padded HBM traffic) ----------------------
    act_bytes = jnp.dtype(act_dtype).itemsize
    out_bytes = jnp.dtype(out_dtype).itemsize
    w_bytes = jnp.dtype(weight.dtype).itemsize
    bytes_accessed = (
        batch * (_pad_lanes(d_g) + _pad_lanes(d_a) + _pad_lanes(d_s)) * act_bytes
        + batch * _pad_lanes(d_out) * out_bytes
        + (d_in + 1) * _pad_lanes(d_out) * w_bytes)
    cost = pl.CostEstimate(flops=2 * batch * d_in * d_out,
                           transcendentals=0,
                           bytes_accessed=bytes_accessed)

    out = pl.pallas_call(
        _fusion_kernel,
        out_shape=jax.ShapeDtypeStruct((rows, d_out), out_dtype),
        grid=grid,
        in_specs=[
            # batch-tiled activations
            pl.BlockSpec((tb, d_g), lambda i: (i, 0)),
            pl.BlockSpec((tb, d_a), lambda i: (i, 0)),
            pl.BlockSpec((tb, d_s), lambda i: (i, 0)),
            # weights / bias stay VMEM-resident across grid iterations
            pl.BlockSpec((d_g, d_out), lambda i: (0, 0)),
            pl.BlockSpec((d_a, d_out), lambda i: (0, 0)),
            pl.BlockSpec((d_s, d_out), lambda i: (0, 0)),
            pl.BlockSpec((1, d_out), lambda i: (0, 0)),
        ],
        out_specs=pl.BlockSpec((tb, d_out), lambda i: (i, 0)),
        compiler_params=pltpu.CompilerParams(
            dimension_semantics=("parallel",),
            # Cap the double-buffered footprint: safe on v7x (64 MiB physical),
            # plenty of headroom on v5e/v6e (128 MiB).
            vmem_limit_bytes=48 * 1024 * 1024),
        cost_estimate=cost,
    )(g, a, s, w_g, w_a, w_s, b2)

    return out


# ---------------------------------------------------------------------------
# Pure-JAX reference (mirrors the torch module)
# ---------------------------------------------------------------------------
def reference_fusion(attentive_emb, graph_emb, sector_emb, weight, bias):
    if graph_emb.ndim > 2:
        graph_emb = jnp.squeeze(graph_emb, axis=1)
    if attentive_emb.ndim > 2:
        attentive_emb = jnp.squeeze(attentive_emb, axis=1)
    concatenated = jnp.concatenate([graph_emb, attentive_emb, sector_emb], axis=-1)
    return jnp.maximum(concatenated @ weight + bias, 0.0)


if __name__ == "__main__":
    attentive_dim, graph_dim, sector_dim, output_dim = 16, 24, 8, 64
    input_dim = attentive_dim + graph_dim + sector_dim

    key = jax.random.PRNGKey(0)
    ks = jax.random.split(key, 10)

    # Deterministic parameter init (Kaiming-uniform-ish, like nn.Linear defaults).
    bound = 1.0 / jnp.sqrt(jnp.float32(input_dim))
    weight = jax.random.uniform(ks[0], (input_dim, output_dim), jnp.float32,
                                minval=-bound, maxval=bound)
    bias = jax.random.uniform(ks[1], (output_dim,), jnp.float32,
                              minval=-bound, maxval=bound)

    # 1) Pallas path, batch big enough for a >=2-step tiled grid; the 3-D
    #    inputs exercise the squeeze(1) glue.
    batch = 512
    a3 = jax.random.normal(ks[2], (batch, 1, attentive_dim), dtype=jnp.float32)
    g3 = jax.random.normal(ks[3], (batch, 1, graph_dim), dtype=jnp.float32)
    s2 = jax.random.normal(ks[4], (batch, sector_dim), dtype=jnp.float32)

    fused = jax.block_until_ready(embedding_fusion(a3, g3, s2, weight, bias))
    expected = reference_fusion(a3, g3, s2, weight, bias)
    assert fused.shape == (batch, output_dim)
    assert jnp.allclose(fused, expected, atol=1e-4, rtol=1e-4)

    # 2) Pallas path with an odd batch (partial last grid block, masked writes).
    batch_odd = 517
    a_odd = jax.random.normal(ks[5], (batch_odd, attentive_dim), dtype=jnp.float32)
    g_odd = jax.random.normal(ks[6], (batch_odd, graph_dim), dtype=jnp.float32)
    s_odd = jax.random.normal(ks[7], (batch_odd, sector_dim), dtype=jnp.float32)
    fused_odd = jax.block_until_ready(
        embedding_fusion(a_odd, g_odd, s_odd, weight, bias, force_pallas=True))
    expected_odd = reference_fusion(a_odd, g_odd, s_odd, weight, bias)
    assert fused_odd.shape == (batch_odd, output_dim)
    assert jnp.allclose(fused_odd, expected_odd, atol=1e-4, rtol=1e-4)

    # 3) Small-batch XLA bypass path.
    batch_small = 8
    a_sm = jax.random.normal(ks[8], (batch_small, 1, attentive_dim), dtype=jnp.float32)
    g_sm = jax.random.normal(ks[9], (batch_small, 1, graph_dim), dtype=jnp.float32)
    s_sm = jax.random.normal(ks[2], (batch_small, sector_dim), dtype=jnp.float32)
    fused_sm = jax.block_until_ready(
        embedding_fusion(a_sm, g_sm, s_sm, weight, bias))
    expected_sm = reference_fusion(a_sm, g_sm, s_sm, weight, bias)
    assert fused_sm.shape == (batch_small, output_dim)
    assert jnp.allclose(fused_sm, expected_sm, atol=1e-4, rtol=1e-4)

    # 4) bf16 I/O through the Pallas path (half the HBM bytes; f32 accumulation
    #    inside the kernel).  Compare against an f32 reference built from the
    #    same bf16-quantized values.
    a16, g16, s16 = (x.astype(jnp.bfloat16) for x in (a3, g3, s2))
    w16 = weight.astype(jnp.bfloat16)
    fused16 = jax.block_until_ready(embedding_fusion(a16, g16, s16, w16, bias))
    expected16 = reference_fusion(a16.astype(jnp.float32), g16.astype(jnp.float32),
                                  s16.astype(jnp.float32), w16.astype(jnp.float32),
                                  bias)
    assert fused16.dtype == jnp.bfloat16
    assert jnp.allclose(fused16.astype(jnp.float32), expected16,
                        atol=5e-2, rtol=5e-2)

    print("KERNEL_OK")
</pallas_src>

<mosaic_0001>
module attributes {stable_mosaic.version = 11 : i64} {
  func.func @_fusion_kernel(%arg0: i32, %arg1: memref<256x24xf32, #tpu.memory_space<vmem>>, %arg2: memref<256x16xf32, #tpu.memory_space<vmem>>, %arg3: memref<256x8xf32, #tpu.memory_space<vmem>>, %arg4: memref<24x64xf32, #tpu.memory_space<vmem>>, %arg5: memref<16x64xf32, #tpu.memory_space<vmem>>, %arg6: memref<8x64xf32, #tpu.memory_space<vmem>>, %arg7: memref<1x64xf32, #tpu.memory_space<vmem>>, %arg8: memref<256x64xf32, #tpu.memory_space<vmem>>) attributes {dimension_semantics = [#tpu.dimension_semantics<parallel>], iteration_bounds = array<i64: 2>, scalar_prefetch = 0 : i64, scratch_operands = 0 : i64, tpu.core_type = #tpu.core_type<tc>, window_params = [{transform_indices = @transform_0, window_bounds = array<i64: 256, 24>}, {transform_indices = @transform_1, window_bounds = array<i64: 256, 16>}, {transform_indices = @transform_2, window_bounds = array<i64: 256, 8>}, {pipeline_mode = #tpu.pipeline_mode<synchronous>, transform_indices = @transform_3, window_bounds = array<i64: 24, 64>}, {pipeline_mode = #tpu.pipeline_mode<synchronous>, transform_indices = @transform_4, window_bounds = array<i64: 16, 64>}, {pipeline_mode = #tpu.pipeline_mode<synchronous>, transform_indices = @transform_5, window_bounds = array<i64: 8, 64>}, {pipeline_mode = #tpu.pipeline_mode<synchronous>, transform_indices = @transform_6, window_bounds = array<i64: 1, 64>}, {transform_indices = @transform_7, window_bounds = array<i64: 256, 64>}]} {
    %c0 = arith.constant 0 : index
    %c0_0 = arith.constant 0 : index
    %0 = vector.load %arg1[%c0, %c0_0] : memref<256x24xf32, #tpu.memory_space<vmem>>, vector<256x24xf32>
    %c0_1 = arith.constant 0 : index
    %c0_2 = arith.constant 0 : index
    %1 = vector.load %arg4[%c0_1, %c0_2] : memref<24x64xf32, #tpu.memory_space<vmem>>, vector<24x64xf32>
    %cst = arith.constant dense<0.000000e+00> : vector<256x64xf32>
    %2 = tpu.matmul %0, %1, %cst {dimension_numbers = #tpu.dot_dimension_numbers<[1], [0], [0], [1], [0, 0, 1, 1], [], []>} : vector<256x24xf32>, vector<24x64xf32>, vector<256x64xf32> -> vector<256x64xf32>
    %c0_3 = arith.constant 0 : index
    %c0_4 = arith.constant 0 : index
    %3 = vector.load %arg2[%c0_3, %c0_4] : memref<256x16xf32, #tpu.memory_space<vmem>>, vector<256x16xf32>
    %c0_5 = arith.constant 0 : index
    %c0_6 = arith.constant 0 : index
    %4 = vector.load %arg5[%c0_5, %c0_6] : memref<16x64xf32, #tpu.memory_space<vmem>>, vector<16x64xf32>
    %cst_7 = arith.constant dense<0.000000e+00> : vector<256x64xf32>
    %5 = tpu.matmul %3, %4, %cst_7 {dimension_numbers = #tpu.dot_dimension_numbers<[1], [0], [0], [1], [0, 0, 1, 1], [], []>} : vector<256x16xf32>, vector<16x64xf32>, vector<256x64xf32> -> vector<256x64xf32>
    %6 = arith.addf %2, %5 : vector<256x64xf32>
    %c0_8 = arith.constant 0 : index
    %c0_9 = arith.constant 0 : index
    %7 = vector.load %arg3[%c0_8, %c0_9] : memref<256x8xf32, #tpu.memory_space<vmem>>, vector<256x8xf32>
    %c0_10 = arith.constant 0 : index
    %c0_11 = arith.constant 0 : index
    %8 = vector.load %arg6[%c0_10, %c0_11] : memref<8x64xf32, #tpu.memory_space<vmem>>, vector<8x64xf32>
    %cst_12 = arith.constant dense<0.000000e+00> : vector<256x64xf32>
    %9 = tpu.matmul %7, %8, %cst_12 {dimension_numbers = #tpu.dot_dimension_numbers<[1], [0], [0], [1], [0, 0, 1, 1], [], []>} : vector<256x8xf32>, vector<8x64xf32>, vector<256x64xf32> -> vector<256x64xf32>
    %10 = arith.addf %6, %9 : vector<256x64xf32>
    %c0_13 = arith.constant 0 : index
    %c0_14 = arith.constant 0 : index
    %11 = vector.load %arg7[%c0_13, %c0_14] : memref<1x64xf32, #tpu.memory_space<vmem>>, vector<1x64xf32>
    %12 = vector.broadcast %11 : vector<1x64xf32> to vector<256x64xf32>
    %13 = arith.addf %10, %12 : vector<256x64xf32>
    %cst_15 = arith.constant 0.000000e+00 : f32
    %14 = vector.broadcast %cst_15 : f32 to vector<256x64xf32>
    %15 = arith.maximumf %13, %14 : vector<256x64xf32>
    %c0_16 = arith.constant 0 : index
    %c0_17 = arith.constant 0 : index
    %16 = vector.load %arg8[%c0_16, %c0_17] : memref<256x64xf32, #tpu.memory_space<vmem>>, vector<256x64xf32>
    tpu.vector_store %arg8[%c0_16, %c0_17], %15 {strides = array<i32>} : memref<256x64xf32, #tpu.memory_space<vmem>>, vector<256x64xf32>,
    return
  }
  func.func @transform_0(%arg0: i32) -> (i32, i32) {
    %c0_i32 = arith.constant 0 : i32
    %c0_i32_0 = arith.constant 0 : i32
    return %arg0, %c0_i32 : i32, i32
  }
  func.func @transform_1(%arg0: i32) -> (i32, i32) {
    %c0_i32 = arith.constant 0 : i32
    %c0_i32_0 = arith.constant 0 : i32
    return %arg0, %c0_i32 : i32, i32
  }
  func.func @transform_2(%arg0: i32) -> (i32, i32) {
    %c0_i32 = arith.constant 0 : i32
    %c0_i32_0 = arith.constant 0 : i32
    return %arg0, %c0_i32 : i32, i32
  }
  func.func @transform_3(%arg0: i32) -> (i32, i32) {
    %c0_i32 = arith.constant 0 : i32
    %c0_i32_0 = arith.constant 0 : i32
    %c0_i32_1 = arith.constant 0 : i32
    return %c0_i32, %c0_i32_0 : i32, i32
  }
  func.func @transform_4(%arg0: i32) -> (i32, i32) {
    %c0_i32 = arith.constant 0 : i32
    %c0_i32_0 = arith.constant 0 : i32
    %c0_i32_1 = arith.constant 0 : i32
    return %c0_i32, %c0_i32_0 : i32, i32
  }
  func.func @transform_5(%arg0: i32) -> (i32, i32) {
    %c0_i32 = arith.constant 0 : i32
    %c0_i32_0 = arith.constant 0 : i32
    %c0_i32_1 = arith.constant 0 : i32
    return %c0_i32, %c0_i32_0 : i32, i32
  }
  func.func @transform_6(%arg0: i32) -> (i32, i32) {
    %c0_i32 = arith.constant 0 : i32
    %c0_i32_0 = arith.constant 0 : i32
    %c0_i32_1 = arith.constant 0 : i32
    return %c0_i32, %c0_i32_0 : i32, i32
  }
  func.func @transform_7(%arg0: i32) -> (i32, i32) {
    %c0_i32 = arith.constant 0 : i32
    %c0_i32_0 = arith.constant 0 : i32
    return %arg0, %c0_i32 : i32, i32
  }
}

</mosaic_0001>

<llo_original>
// kernel: tpu_custom_call.1
$region0: #{tpu_custom_call.1}
  #allocation0 [shape = 'u32[]', space=smem, size = 0x4, offset = 0x4, fixed_abs, tag = 'smem constant byte address 0x4 - core index']
  #allocation1 [shape = 'u32[144,128]{1,0:T(1,128)}', space=vmem, size = 0x12000, scoped, tag = 'internal scratch']
  %s0 = inlined_call_operand.vmem [shape: f32[512,24], index: 0, kind: input, shape index: {}]
  %s1 = inlined_call_operand.vmem [shape: f32[512,16], index: 1, kind: input, shape index: {}]
  %s2 = inlined_call_operand.vmem [shape: f32[512,8], index: 2, kind: input, shape index: {}]
  %s3 = inlined_call_operand.vmem [shape: f32[24,64], index: 3, kind: input, shape index: {}]
  %s4 = inlined_call_operand.vmem [shape: f32[16,64], index: 4, kind: input, shape index: {}]
  %s5 = inlined_call_operand.vmem [shape: f32[8,64], index: 5, kind: input, shape index: {}]
  %s6 = inlined_call_operand.vmem [shape: f32[1,64], index: 6, kind: input, shape index: {}]
  %s7 = inlined_call_operand.vmem [shape: f32[512,64], index: 7, kind: output, shape index: {}]
  %s8 = sld [smem:[#allocation0]]
  $region61: #{tpu_custom_call.1} parent=0
    _
  %s10 = ssub.s32 1, %s8
  %s11 = scalar_select 0, %s10, %s8
  loop: start=0, step=1, limit=4
  $region2: #{tpu_custom_call.1} parent=0 // loop_pre_header
    _
  $region3: #{tpu_custom_call.1} parent=0 // loop_header
    %s13 = sphi 0, %s17
    %p14 = scmp.ge.s32.totalorder %s13, 4
    %s23 = sphi 0, %s25
    %s26 = sphi 0, %s23
    %s27 = sphi 0, %s26
    %s43 = sphi 0, %s27
    %s49 = sphi 0, %s51
    %s52 = sphi 0, %s49
    %s53 = sphi 0, %s52
    %s69 = sphi 0, %s53
    %s75 = sphi 0, %s77
    %s78 = sphi 0, %s75
    %s79 = sphi 0, %s78
    %s95 = sphi 0, %s79
    %s99 = sphi 0, %s99
    %s101 = sphi 0, %s99
    %s102 = sphi 0, %s101
    %s116 = sphi 0, %s102
    %s120 = sphi 0, %s120
    %s122 = sphi 0, %s120
    %s123 = sphi 0, %s122
    %s137 = sphi 0, %s123
    %s141 = sphi 0, %s141
    %s143 = sphi 0, %s141
    %s144 = sphi 0, %s143
    %s158 = sphi 0, %s144
    %s162 = sphi 0, %s162
    %s164 = sphi 0, %s162
    %s165 = sphi 0, %s164
    %s179 = sphi 0, %s165
    %s185 = sphi 0, %s187
    %s188 = sphi 0, %s185
    %s189 = sphi 0, %s188
    %s205 = sphi 0, %s189
  $region4: #{tpu_custom_call.1} parent=0 // loop_header_branch
    %16 = sbr.rel (%p14) target = $region8
  $region5: #{tpu_custom_call.1} parent=0 // loop_body
    %s18 = ssub.s32 %s13, 1
    %s19 = ssub.s32 %s13, 2
    %s20 = sadd.s32 %s13, 1
    %s21 = ssub.s32 %s13, %s20
    %p22 = scmp.eq.s32.totalorder %s21, 0
    %s24 = sadd.s32 %s23, 1
    %s25 = scalar_select %p22, %s23, %s24
    %p28 = pneg %p22
    %p29 = scmp.eq.s32.totalorder %s13, 1
    %p30 = por %p28, %p29
    %p31 = scmp.ne.s32.totalorder %s23, %s26
    %p32 = scmp.eq.s32.totalorder %s13, 0
    %p33 = por %p31, %p32
    %p34 = scmp.ne.s32.totalorder %s23, %s26
    %p35 = scmp.eq.s32.totalorder %s18, 1
    %p36 = por %p34, %p35
    %p37 = scmp.ne.s32.totalorder %s26, %s27
    %p38 = scmp.eq.s32.totalorder %s18, 0
    %p39 = por %p37, %p38
    %p40 = scmp.ne.s32.totalorder %s26, %s27
    %p41 = scmp.eq.s32.totalorder %s19, 1
    %p42 = por %p40, %p41
    %p44 = scmp.ne.s32.totalorder %s27, %s43
    %p45 = scmp.eq.s32.totalorder %s19, 0
    %p46 = por %p44, %p45
    %s47 = ssub.s32 %s13, %s20
    %p48 = scmp.eq.s32.totalorder %s47, 0
    %s50 = sadd.s32 %s49, 1
    %s51 = scalar_select %p48, %s49, %s50
    %p54 = pneg %p48
    %p55 = scmp.eq.s32.totalorder %s13, 1
    %p56 = por %p54, %p55
    %p57 = scmp.ne.s32.totalorder %s49, %s52
    %p58 = scmp.eq.s32.totalorder %s13, 0
    %p59 = por %p57, %p58
    %p60 = scmp.ne.s32.totalorder %s49, %s52
    %p61 = scmp.eq.s32.totalorder %s18, 1
    %p62 = por %p60, %p61
    %p63 = scmp.ne.s32.totalorder %s52, %s53
    %p64 = scmp.eq.s32.totalorder %s18, 0
    %p65 = por %p63, %p64
    %p66 = scmp.ne.s32.totalorder %s52, %s53
    %p67 = scmp.eq.s32.totalorder %s19, 1
    %p68 = por %p66, %p67
    %p70 = scmp.ne.s32.totalorder %s53, %s69
    %p71 = scmp.eq.s32.totalorder %s19, 0
    %p72 = por %p70, %p71
    %s73 = ssub.s32 %s13, %s20
    %p74 = scmp.eq.s32.totalorder %s73, 0
    %s76 = sadd.s32 %s75, 1
    %s77 = scalar_select %p74, %s75, %s76
    %p80 = pneg %p74
    %p81 = scmp.eq.s32.totalorder %s13, 1
    %p82 = por %p80, %p81
    %p83 = scmp.ne.s32.totalorder %s75, %s78
    %p84 = scmp.eq.s32.totalorder %s13, 0
    %p85 = por %p83, %p84
    %p86 = scmp.ne.s32.totalorder %s75, %s78
    %p87 = scmp.eq.s32.totalorder %s18, 1
    %p88 = por %p86, %p87
    %p89 = scmp.ne.s32.totalorder %s78, %s79
    %p90 = scmp.eq.s32.totalorder %s18, 0
    %p91 = por %p89, %p90
    %p92 = scmp.ne.s32.totalorder %s78, %s79
    %p93 = scmp.eq.s32.totalorder %s19, 1
    %p94 = por %p92, %p93
    %p96 = scmp.ne.s32.totalorder %s79, %s95
    %p97 = scmp.eq.s32.totalorder %s19, 0
    %p98 = por %p96, %p97
    %s100 = sadd.s32 %s99, 1
    %p103 = scmp.eq.s32.totalorder %s13, 1
    %p104 = scmp.ne.s32.totalorder %s99, %s101
    %p105 = scmp.eq.s32.totalorder %s13, 0
    %p106 = por %p104, %p105
    %p107 = scmp.ne.s32.totalorder %s99, %s101
    %p108 = scmp.eq.s32.totalorder %s18, 1
    %p109 = por %p107, %p108
    %p110 = scmp.ne.s32.totalorder %s101, %s102
    %p111 = scmp.eq.s32.totalorder %s18, 0
    %p112 = por %p110, %p111
    %p113 = scmp.ne.s32.totalorder %s101, %s102
    %p114 = scmp.eq.s32.totalorder %s19, 1
    %p115 = por %p113, %p114
    %p117 = scmp.ne.s32.totalorder %s102, %s116
    %p118 = scmp.eq.s32.totalorder %s19, 0
    %p119 = por %p117, %p118
    %s121 = sadd.s32 %s120, 1
    %p124 = scmp.eq.s32.totalorder %s13, 1
    %p125 = scmp.ne.s32.totalorder %s120, %s122
    %p126 = scmp.eq.s32.totalorder %s13, 0
    %p127 = por %p125, %p126
    %p128 = scmp.ne.s32.totalorder %s120, %s122
    %p129 = scmp.eq.s32.totalorder %s18, 1
    %p130 = por %p128, %p129
    %p131 = scmp.ne.s32.totalorder %s122, %s123
    %p132 = scmp.eq.s32.totalorder %s18, 0
    %p133 = por %p131, %p132
    %p134 = scmp.ne.s32.totalorder %s122, %s123
    %p135 = scmp.eq.s32.totalorder %s19, 1
    %p136 = por %p134, %p135
    %p138 = scmp.ne.s32.totalorder %s123, %s137
    %p139 = scmp.eq.s32.totalorder %s19, 0
    %p140 = por %p138, %p139
    %s142 = sadd.s32 %s141, 1
    %p145 = scmp.eq.s32.totalorder %s13, 1
    %p146 = scmp.ne.s32.totalorder %s141, %s143
    %p147 = scmp.eq.s32.totalorder %s13, 0
    %p148 = por %p146, %p147
    %p149 = scmp.ne.s32.totalorder %s141, %s143
    %p150 = scmp.eq.s32.totalorder %s18, 1
    %p151 = por %p149, %p150
    %p152 = scmp.ne.s32.totalorder %s143, %s144
    %p153 = scmp.eq.s32.totalorder %s18, 0
    %p154 = por %p152, %p153
    %p155 = scmp.ne.s32.totalorder %s143, %s144
    %p156 = scmp.eq.s32.totalorder %s19, 1
    %p157 = por %p155, %p156
    %p159 = scmp.ne.s32.totalorder %s144, %s158
    %p160 = scmp.eq.s32.totalorder %s19, 0
    %p161 = por %p159, %p160
    %s163 = sadd.s32 %s162, 1
    %p166 = scmp.eq.s32.totalorder %s13, 1
    %p167 = scmp.ne.s32.totalorder %s162, %s164
    %p168 = scmp.eq.s32.totalorder %s13, 0
    %p169 = por %p167, %p168
    %p170 = scmp.ne.s32.totalorder %s162, %s164
    %p171 = scmp.eq.s32.totalorder %s18, 1
    %p172 = por %p170, %p171
    %p173 = scmp.ne.s32.totalorder %s164, %s165
    %p174 = scmp.eq.s32.totalorder %s18, 0
    %p175 = por %p173, %p174
    %p176 = scmp.ne.s32.totalorder %s164, %s165
    %p177 = scmp.eq.s32.totalorder %s19, 1
    %p178 = por %p176, %p177
    %p180 = scmp.ne.s32.totalorder %s165, %s179
    %p181 = scmp.eq.s32.totalorder %s19, 0
    %p182 = por %p180, %p181
    %s183 = ssub.s32 %s13, %s20
    %p184 = scmp.eq.s32.totalorder %s183, 0
    %s186 = sadd.s32 %s185, 1
    %s187 = scalar_select %p184, %s185, %s186
    %p190 = pneg %p184
    %p191 = scmp.eq.s32.totalorder %s13, 1
    %p192 = por %p190, %p191
    %p193 = scmp.ne.s32.totalorder %s185, %s188
    %p194 = scmp.eq.s32.totalorder %s13, 0
    %p195 = por %p193, %p194
    %p196 = scmp.ne.s32.totalorder %s185, %s188
    %p197 = scmp.eq.s32.totalorder %s18, 1
    %p198 = por %p196, %p197
    %p199 = scmp.ne.s32.totalorder %s188, %s189
    %p200 = scmp.eq.s32.totalorder %s18, 0
    %p201 = por %p199, %p200
    %p202 = scmp.ne.s32.totalorder %s188, %s189
    %p203 = scmp.eq.s32.totalorder %s19, 1
    %p204 = por %p202, %p203
    %p206 = scmp.ne.s32.totalorder %s189, %s205
    %p207 = scmp.eq.s32.totalorder %s19, 0
    %p208 = por %p206, %p207
    %p209 = scmp.le.s32.totalorder 1, %s13
    %p210 = scmp.lt.s32.totalorder %s13, 3
    %p211 = pnand %p209, %p210
    %p212 = pneg %p211
    // Predicated region
    $region9: #{tpu_custom_call.1} parent=5 // pred_check
      _
    $region10: #{tpu_custom_call.1} parent=5 // pred_check_branch
      %214 = sbr.rel (%p211) target = $region12
    $region11: #{tpu_custom_call.1} parent=5 // pred_region
      %s215 = ssub.s32 %s13, 1
      // Predicated region
      $region13: #{tpu_custom_call.1} parent=11 // pred_check
        %p216 = pneg %p112
      $region14: #{tpu_custom_call.1} parent=11 // pred_check_branch
        %218 = sbr.rel (%p216) target = $region16
      $region15: #{tpu_custom_call.1} parent=11 // pred_region
        _
      $region16: #{tpu_custom_call.1} parent=11 // pred_fallthru
        _
      // Predicated region
      $region17: #{tpu_custom_call.1} parent=11 // pred_check
        %p219 = pneg %p133
      $region18: #{tpu_custom_call.1} parent=11 // pred_check_branch
        %221 = sbr.rel (%p219) target = $region20
      $region19: #{tpu_custom_call.1} parent=11 // pred_region
        _
      $region20: #{tpu_custom_call.1} parent=11 // pred_fallthru
        _
      // Predicated region
      $region21: #{tpu_custom_call.1} parent=11 // pred_check
        %p222 = pneg %p154
      $region22: #{tpu_custom_call.1} parent=11 // pred_check_branch
        %224 = sbr.rel (%p222) target = $region24
      $region23: #{tpu_custom_call.1} parent=11 // pred_region
        _
      $region24: #{tpu_custom_call.1} parent=11 // pred_fallthru
        _
      // Predicated region
      $region25: #{tpu_custom_call.1} parent=11 // pred_check
        %p225 = pneg %p175
      $region26: #{tpu_custom_call.1} parent=11 // pred_check_branch
        %227 = sbr.rel (%p225) target = $region28
      $region27: #{tpu_custom_call.1} parent=11 // pred_region
        _
      $region28: #{tpu_custom_call.1} parent=11 // pred_fallthru
        _
    $region12: #{tpu_custom_call.1} parent=5 // pred_fallthru
      _
    %p228 = scmp.lt.s32.totalorder %s13, 2
    // Predicated region
    $region29: #{tpu_custom_call.1} parent=5 // pred_check
      %p229 = pneg %p228
    $region30: #{tpu_custom_call.1} parent=5 // pred_check_branch
      %231 = sbr.rel (%p229) target = $region32
    $region31: #{tpu_custom_call.1} parent=5 // pred_region
      // Predicated region
      $region33: #{tpu_custom_call.1} parent=31 // pred_check
        %p232 = pneg %p33
      $region34: #{tpu_custom_call.1} parent=31 // pred_check_branch
        %234 = sbr.rel (%p232) target = $region36
      $region35: #{tpu_custom_call.1} parent=31 // pred_region
        %s235 = smul.u32 32, %s13
        %p236 = scmp.lt.s32.totalorder %s235, 63
        %s237 = scalar_select %p236, %s235, 63
        %s238 = smul.addr %s237, 8
        %s239 = scalar_lea.vmem %s0, %s238
        %s240 = smul.u32 32, %s13
      $region36: #{tpu_custom_call.1} parent=31 // pred_fallthru
        _
      // Predicated region
      $region37: #{tpu_custom_call.1} parent=31 // pred_check
        %p241 = pneg %p59
      $region38: #{tpu_custom_call.1} parent=31 // pred_check_branch
        %243 = sbr.rel (%p241) target = $region40
      $region39: #{tpu_custom_call.1} parent=31 // pred_region
        %s244 = smul.u32 32, %s13
        %p245 = scmp.lt.s32.totalorder %s244, 63
        %s246 = scalar_select %p245, %s244, 63
        %s247 = smul.addr %s246, 8
        %s248 = scalar_lea.vmem %s1, %s247
        %s249 = smul.u32 32, %s13
      $region40: #{tpu_custom_call.1} parent=31 // pred_fallthru
        _
      // Predicated region
      $region41: #{tpu_custom_call.1} parent=31 // pred_check
        %p250 = pneg %p85
      $region42: #{tpu_custom_call.1} parent=31 // pred_check_branch
        %252 = sbr.rel (%p250) target = $region44
      $region43: #{tpu_custom_call.1} parent=31 // pred_region
        %s253 = smul.u32 32, %s13
        %p254 = scmp.lt.s32.totalorder %s253, 63
        %s255 = scalar_select %p254, %s253, 63
        %s256 = smul.addr %s255, 8
        %s257 = scalar_lea.vmem %s2, %s256
        %s258 = smul.u32 32, %s13
      $region44: #{tpu_custom_call.1} parent=31 // pred_fallthru
        _
    $region32: #{tpu_custom_call.1} parent=5 // pred_fallthru
      _
    %p259 = scmp.le.s32.totalorder 1, %s13
    %p260 = scmp.lt.s32.totalorder %s13, 3
    %p261 = pnand %p259, %p260
    %p262 = pneg %p261
    // Predicated region
    $region45: #{tpu_custom_call.1} parent=5 // pred_check
      _
    $region46: #{tpu_custom_call.1} parent=5 // pred_check_branch
      %264 = sbr.rel (%p261) target = $region48
    $region47: #{tpu_custom_call.1} parent=5 // pred_region
      %s265 = ssub.s32 %s13, 1
      %s266 = smul.u32 32, %s18
      %p267 = scmp.lt.s32.totalorder %s266, 63
      %s268 = scalar_select %p267, %s266, 63
      %s269 = smul.addr %s268, 8
      %s270 = scalar_lea.vmem %s0, %s269
      %p271 = pneg %p39
      %p272 = pneg %p36
      %s273 = smul.u32 32, %s18
      %p274 = scmp.lt.s32.totalorder %s273, 63
      %s275 = scalar_select %p274, %s273, 63
      %s276 = smul.addr %s275, 8
      %s277 = scalar_lea.vmem %s1, %s276
      %p278 = pneg %p65
      %p279 = pneg %p62
      %s280 = smul.u32 32, %s18
      %p281 = scmp.lt.s32.totalorder %s280, 63
      %s282 = scalar_select %p281, %s280, 63
      %s283 = smul.addr %s282, 8
      %s284 = scalar_lea.vmem %s2, %s283
      %p285 = pneg %p91
      %p286 = pneg %p88
      %p287 = pneg %p112
      %p288 = pneg %p109
      %p289 = pneg %p133
      %p290 = pneg %p130
      %p291 = pneg %p154
      %p292 = pneg %p151
      %p293 = pneg %p175
      %p294 = pneg %p172
      %p295 = pneg %p201
      %p296 = pneg %p198
      %s297 = smul.u32 32, %s18
      %p298 = scmp.lt.s32.totalorder %s297, 63
      %s299 = scalar_select %p298, %s297, 63
      %s300 = smul.addr %s299, 8
      %s301 = scalar_lea.vmem %s7, %s300
      %s302 = smul.u32 32, %s18
      %p303 = scmp.lt.s32.totalorder %s302, 63
      %s304 = scalar_select %p303, %s302, 63
      %s305 = smul.addr %s304, 8
      %s306 = scalar_lea.vmem %s0, %s305
      %s307 = smul.u32 32, %s18
      %s308 = smul.u32 32, %s18
      %p309 = scmp.lt.s32.totalorder %s308, 63
      %s310 = scalar_select %p309, %s308, 63
      %s311 = smul.addr %s310, 8
      %s312 = scalar_lea.vmem %s1, %s311
      %s313 = smul.u32 32, %s18
      %s314 = smul.u32 32, %s18
      %p315 = scmp.lt.s32.totalorder %s314, 63
      %s316 = scalar_select %p315, %s314, 63
      %s317 = smul.addr %s316, 8
      %s318 = scalar_lea.vmem %s2, %s317
      %s319 = smul.u32 32, %s18
      %s320 = smul.u32 32, %s18
      %p321 = scmp.lt.s32.totalorder %s320, 63
      %s322 = scalar_select %p321, %s320, 63
      %s323 = smul.addr %s322, 8
      %s324 = scalar_lea.vmem %s7, %s323
      %s325 = smul.u32 32, %s18
      %v326 = vld [vmem:[%s306] sm:$0xff]
      %v327 = vld [vmem:[%s306 + $0x8] sm:$0xff]
      %v328 = vld [vmem:[%s306 + $0x10] sm:$0xff]
      %v329 = vld [vmem:[%s306 + $0x18] sm:$0xff]
      %v330 = vld [vmem:[%s306 + $0x20] sm:$0xff]
      %v331 = vld [vmem:[%s306 + $0x28] sm:$0xff]
      %v332 = vld [vmem:[%s306 + $0x30] sm:$0xff]
      %v333 = vld [vmem:[%s306 + $0x38] sm:$0xff]
      %v334 = vld [vmem:[%s306 + $0x40] sm:$0xff]
      %v335 = vld [vmem:[%s306 + $0x48] sm:$0xff]
      %v336 = vld [vmem:[%s306 + $0x50] sm:$0xff]
      %v337 = vld [vmem:[%s306 + $0x58] sm:$0xff]
      %v338 = vld [vmem:[%s306 + $0x60] sm:$0xff]
      %v339 = vld [vmem:[%s306 + $0x68] sm:$0xff]
      %v340 = vld [vmem:[%s306 + $0x70] sm:$0xff]
      %v341 = vld [vmem:[%s306 + $0x78] sm:$0xff]
      %v342 = vld [vmem:[%s306 + $0x80] sm:$0xff]
      %v343 = vld [vmem:[%s306 + $0x88] sm:$0xff]
      %v344 = vld [vmem:[%s306 + $0x90] sm:$0xff]
      %v345 = vld [vmem:[%s306 + $0x98] sm:$0xff]
      %v346 = vld [vmem:[%s306 + $0xa0] sm:$0xff]
      %v347 = vld [vmem:[%s306 + $0xa8] sm:$0xff]
      %v348 = vld [vmem:[%s306 + $0xb0] sm:$0xff]
      %v349 = vld [vmem:[%s306 + $0xb8] sm:$0xff]
      %v350 = vld [vmem:[%s306 + $0xc0] sm:$0xff]
      %v351 = vld [vmem:[%s306 + $0xc8] sm:$0xff]
      %v352 = vld [vmem:[%s306 + $0xd0] sm:$0xff]
      %v353 = vld [vmem:[%s306 + $0xd8] sm:$0xff]
      %v354 = vld [vmem:[%s306 + $0xe0] sm:$0xff]
      %v355 = vld [vmem:[%s306 + $0xe8] sm:$0xff]
      %v356 = vld [vmem:[%s306 + $0xf0] sm:$0xff]
      %v357 = vld [vmem:[%s306 + $0xf8] sm:$0xff]
      %v358 = vld [vmem:[%s3] sm:$0xff]
      %v359 = vld [vmem:[%s3 + $0x8] sm:$0xff]
      %v360 = vld [vmem:[%s3 + $0x10] sm:$0xff]
      %v361 = vld [vmem:[%s312] sm:$0xff]
      %v362 = vld [vmem:[%s312 + $0x8] sm:$0xff]
      %v363 = vld [vmem:[%s312 + $0x10] sm:$0xff]
      %v364 = vld [vmem:[%s312 + $0x18] sm:$0xff]
      %v365 = vld [vmem:[%s312 + $0x20] sm:$0xff]
      %v366 = vld [vmem:[%s312 + $0x28] sm:$0xff]
      %v367 = vld [vmem:[%s312 + $0x30] sm:$0xff]
      %v368 = vld [vmem:[%s312 + $0x38] sm:$0xff]
      %v369 = vld [vmem:[%s312 + $0x40] sm:$0xff]
      %v370 = vld [vmem:[%s312 + $0x48] sm:$0xff]
      %v371 = vld [vmem:[%s312 + $0x50] sm:$0xff]
      %v372 = vld [vmem:[%s312 + $0x58] sm:$0xff]
      %v373 = vld [vmem:[%s312 + $0x60] sm:$0xff]
      %v374 = vld [vmem:[%s312 + $0x68] sm:$0xff]
      %v375 = vld [vmem:[%s312 + $0x70] sm:$0xff]
      %v376 = vld [vmem:[%s312 + $0x78] sm:$0xff]
      %v377 = vld [vmem:[%s312 + $0x80] sm:$0xff]
      %v378 = vld [vmem:[%s312 + $0x88] sm:$0xff]
      %v379 = vld [vmem:[%s312 + $0x90] sm:$0xff]
      %v380 = vld [vmem:[%s312 + $0x98] sm:$0xff]
      %v381 = vld [vmem:[%s312 + $0xa0] sm:$0xff]
      %v382 = vld [vmem:[%s312 + $0xa8] sm:$0xff]
      %v383 = vld [vmem:[%s312 + $0xb0] sm:$0xff]
      %v384 = vld [vmem:[%s312 + $0xb8] sm:$0xff]
      %v385 = vld [vmem:[%s312 + $0xc0] sm:$0xff]
      %v386 = vld [vmem:[%s312 + $0xc8] sm:$0xff]
      %v387 = vld [vmem:[%s312 + $0xd0] sm:$0xff]
      %v388 = vld [vmem:[%s312 + $0xd8] sm:$0xff]
      %v389 = vld [vmem:[%s312 + $0xe0] sm:$0xff]
      %v390 = vld [vmem:[%s312 + $0xe8] sm:$0xff]
      %v391 = vld [vmem:[%s312 + $0xf0] sm:$0xff]
      %v392 = vld [vmem:[%s312 + $0xf8] sm:$0xff]
      %v393 = vld [vmem:[%s4] sm:$0xff]
      %v394 = vld [vmem:[%s4 + $0x8] sm:$0xff]
      %vm395 = vcmask 130048
      %v397 = vsel %vm395, %v361, 0
      %v400 = vsel %vm395, %v362, 0
      %v403 = vsel %vm395, %v363, 0
      %v406 = vsel %vm395, %v364, 0
      %v409 = vsel %vm395, %v365, 0
      %v412 = vsel %vm395, %v366, 0
      %v415 = vsel %vm395, %v367, 0
      %v418 = vsel %vm395, %v368, 0
      %v421 = vsel %vm395, %v369, 0
      %v424 = vsel %vm395, %v370, 0
      %v427 = vsel %vm395, %v371, 0
      %v430 = vsel %vm395, %v372, 0
      %v433 = vsel %vm395, %v373, 0
      %v436 = vsel %vm395, %v374, 0
      %v439 = vsel %vm395, %v375, 0
      %v442 = vsel %vm395, %v376, 0
      %v445 = vsel %vm395, %v377, 0
      %v448 = vsel %vm395, %v378, 0
      %v451 = vsel %vm395, %v379, 0
      %v454 = vsel %vm395, %v380, 0
      %v457 = vsel %vm395, %v381, 0
      %v460 = vsel %vm395, %v382, 0
      %v463 = vsel %vm395, %v383, 0
      %v466 = vsel %vm395, %v384, 0
      %v469 = vsel %vm395, %v385, 0
      %v472 = vsel %vm395, %v386, 0
      %v475 = vsel %vm395, %v387, 0
      %v478 = vsel %vm395, %v388, 0
      %v481 = vsel %vm395, %v389, 0
      %v484 = vsel %vm395, %v390, 0
      %v487 = vsel %vm395, %v391, 0
      %v490 = vsel %vm395, %v392, 0
      %492 = vmatprep.subr.mxu0 0.0
      %493 = vmatpush1.msra.mxu0 %v393
      %494 = vmatprep.subr.mxu0 0.0
      %495 = vmatpush1.msra.mxu0 %v394
      %496 = vmatprep.subr.mxu0 0.0
      %497 = vmatpush1.msra.mxu0 0.0
      %498 = vmatprep.subr.mxu0 0.0
      %499 = vmatpush1.msra.mxu0 0.0
      %500 = vmatprep.subr.mxu0 0.0
      %501 = vmatpush1.msra.mxu0 0.0
      %502 = vmatprep.subr.mxu0 0.0
      %503 = vmatpush1.msra.mxu0 0.0
      %504 = vmatprep.subr.mxu0 0.0
      %505 = vmatpush1.msra.mxu0 0.0
      %506 = vmatprep.subr.mxu0 0.0
      %507 = vmatpush1.msra.mxu0 0.0
      %508 = vmatprep.subr.mxu0 0.0
      %509 = vmatpush1.msra.mxu0 0.0
      %510 = vmatprep.subr.mxu0 0.0
      %511 = vmatpush1.msra.mxu0 0.0
      %512 = vmatprep.subr.mxu0 0.0
      %513 = vmatpush1.msra.mxu0 0.0
      %514 = vmatprep.subr.mxu0 0.0
      %515 = vmatpush1.msra.mxu0 0.0
      %516 = vmatprep.subr.mxu0 0.0
      %517 = vmatpush1.msra.mxu0 0.0
      %518 = vmatprep.subr.mxu0 0.0
      %519 = vmatpush1.msra.mxu0 0.0
      %520 = vmatprep.subr.mxu0 0.0
      %521 = vmatpush1.msra.mxu0 0.0
      %522 = vmatprep.subr.mxu0 0.0
      %523 = vmatpush1.msra.mxu0 0.0
      %524 = vmatprep.subr.mxu0 0.0
      %525 = vmatpush1.msra.mxu0 0.0
      %526 = vmatprep.subr.mxu0 0.0
      %527 = vmatpush1.msra.mxu0 0.0
      %528 = vmatprep.subr.mxu0 0.0
      %529 = vmatpush1.msra.mxu0 0.0
      %530 = vmatprep.subr.mxu0 0.0
      %531 = vmatpush1.msra.mxu0 0.0
      %532 = vmatprep.subr.mxu0 0.0
      %533 = vmatpush1.msra.mxu0 0.0
      %534 = vmatprep.subr.mxu0 0.0
      %535 = vmatpush1.msra.mxu0 0.0
      %536 = vmatprep.subr.mxu0 0.0
      %537 = vmatpush1.msra.mxu0 0.0
      %538 = vmatprep.subr.mxu0 0.0
      %539 = vmatpush1.msra.mxu0 0.0
      %540 = vmatprep.subr.mxu0 0.0
      %541 = vmatpush1.msra.mxu0 0.0
      %542 = vmatprep.subr.mxu0 0.0
      %543 = vmatpush1.msra.mxu0 0.0
      %544 = vmatprep.subr.mxu0 0.0
      %545 = vmatpush1.msra.mxu0 0.0
      %546 = vmatprep.subr.mxu0 0.0
      %547 = vmatpush1.msra.mxu0 0.0
      %548 = vmatprep.subr.mxu0 0.0
      %549 = vmatpush1.msra.mxu0 0.0
      %550 = vmatprep.subr.mxu0 0.0
      %551 = vmatpush1.msra.mxu0 0.0
      %552 = vmatprep.subr.mxu0 0.0
      %553 = vmatpush1.msra.mxu0 0.0
      %554 = vmatprep.subr.mxu0 0.0
      %555 = vmatpush1.msra.mxu0 0.0
      %556 = vmatprep.mubr.f32.mxu0 0.0
      %557 = vmatmul.mubr.f32.gmra.mrb[0].mxu0 %v397
      %v558 = vpop.f32.mrb[0].mxu0
      %v559 = vadd.f32 0.0, %v558
      %v560 = vpop.f32.mrb[0].mxu0
      %561 = vmatprep.mubr.f32.mxu0 0.0
      %562 = vmatmul.mubr.f32.gmra.mrb[0].mxu0 %v400
      %v563 = vpop.f32.mrb[0].mxu0
      %v564 = vadd.f32 0.0, %v563
      %v565 = vpop.f32.mrb[0].mxu0
      %566 = vmatprep.mubr.f32.mxu0 0.0
      %567 = vmatmul.mubr.f32.gmra.mrb[0].mxu0 %v403
      %v568 = vpop.f32.mrb[0].mxu0
      %v569 = vadd.f32 0.0, %v568
      %v570 = vpop.f32.mrb[0].mxu0
      %571 = vmatprep.mubr.f32.mxu0 0.0
      %572 = vmatmul.mubr.f32.gmra.mrb[0].mxu0 %v406
      %v573 = vpop.f32.mrb[0].mxu0
      %v574 = vadd.f32 0.0, %v573
      %v575 = vpop.f32.mrb[0].mxu0
      %576 = vmatprep.mubr.f32.mxu0 0.0
      %577 = vmatmul.mubr.f32.gmra.mrb[0].mxu0 %v409
      %v578 = vpop.f32.mrb[0].mxu0
      %v579 = vadd.f32 0.0, %v578
      %v580 = vpop.f32.mrb[0].mxu0
      %581 = vmatprep.mubr.f32.mxu0 0.0
      %582 = vmatmul.mubr.f32.gmra.mrb[0].mxu0 %v412
      %v583 = vpop.f32.mrb[0].mxu0
      %v584 = vadd.f32 0.0, %v583
      %v585 = vpop.f32.mrb[0].mxu0
      %586 = vmatprep.mubr.f32.mxu0 0.0
      %587 = vmatmul.mubr.f32.gmra.mrb[0].mxu0 %v415
      %v588 = vpop.f32.mrb[0].mxu0
      %v589 = vadd.f32 0.0, %v588
      %v590 = vpop.f32.mrb[0].mxu0
      %591 = vmatprep.mubr.f32.mxu0 0.0
      %592 = vmatmul.mubr.f32.gmra.mrb[0].mxu0 %v418
      %v593 = vpop.f32.mrb[0].mxu0
      %v594 = vadd.f32 0.0, %v593
      %v595 = vpop.f32.mrb[0].mxu0
      %596 = vmatprep.mubr.f32.mxu0 0.0
      %597 = vmatmul.mubr.f32.gmra.mrb[0].mxu0 %v421
      %v598 = vpop.f32.mrb[0].mxu0
      %v599 = vadd.f32 0.0, %v598
      %v600 = vpop.f32.mrb[0].mxu0
      %601 = vmatprep.mubr.f32.mxu0 0.0
      %602 = vmatmul.mubr.f32.gmra.mrb[0].mxu0 %v424
      %v603 = vpop.f32.mrb[0].mxu0
      %v604 = vadd.f32 0.0, %v603
      %v605 = vpop.f32.mrb[0].mxu0
      %606 = vmatprep.mubr.f32.mxu0 0.0
      %607 = vmatmul.mubr.f32.gmra.mrb[0].mxu0 %v427
      %v608 = vpop.f32.mrb[0].mxu0
      %v609 = vadd.f32 0.0, %v608
      %v610 = vpop.f32.mrb[0].mxu0
      %611 = vmatprep.mubr.f32.mxu0 0.0
      %612 = vmatmul.mubr.f32.gmra.mrb[0].mxu0 %v430
      %v613 = vpop.f32.mrb[0].mxu0
      %v614 = vadd.f32 0.0, %v613
      %v615 = vpop.f32.mrb[0].mxu0
      %616 = vmatprep.mubr.f32.mxu0 0.0
      %617 = vmatmul.mubr.f32.gmra.mrb[0].mxu0 %v433
      %v618 = vpop.f32.mrb[0].mxu0
      %v619 = vadd.f32 0.0, %v618
      %v620 = vpop.f32.mrb[0].mxu0
      %621 = vmatprep.mubr.f32.mxu0 0.0
      %622 = vmatmul.mubr.f32.gmra.mrb[0].mxu0 %v436
      %v623 = vpop.f32.mrb[0].mxu0
      %v624 = vadd.f32 0.0, %v623
      %v625 = vpop.f32.mrb[0].mxu0
      %626 = vmatprep.mubr.f32.mxu0 0.0
      %627 = vmatmul.mubr.f32.gmra.mrb[0].mxu0 %v439
      %v628 = vpop.f32.mrb[0].mxu0
      %v629 = vadd.f32 0.0, %v628
      %v630 = vpop.f32.mrb[0].mxu0
      %631 = vmatprep.mubr.f32.mxu0 0.0
      %632 = vmatmul.mubr.f32.gmra.mrb[0].mxu0 %v442
      %v633 = vpop.f32.mrb[0].mxu0
      %v634 = vadd.f32 0.0, %v633
      %v635 = vpop.f32.mrb[0].mxu0
      %636 = vmatprep.mubr.f32.mxu0 0.0
      %637 = vmatmul.mubr.f32.gmra.mrb[0].mxu0 %v445
      %v638 = vpop.f32.mrb[0].mxu0
      %v639 = vadd.f32 0.0, %v638
      %v640 = vpop.f32.mrb[0].mxu0
      %641 = vmatprep.mubr.f32.mxu0 0.0
      %642 = vmatmul.mubr.f32.gmra.mrb[0].mxu0 %v448
      %v643 = vpop.f32.mrb[0].mxu0
      %v644 = vadd.f32 0.0, %v643
      %v645 = vpop.f32.mrb[0].mxu0
      %646 = vmatprep.mubr.f32.mxu0 0.0
      %647 = vmatmul.mubr.f32.gmra.mrb[0].mxu0 %v451
      %v648 = vpop.f32.mrb[0].mxu0
      %v649 = vadd.f32 0.0, %v648
      %v650 = vpop.f32.mrb[0].mxu0
      %651 = vmatprep.mubr.f32.mxu0 0.0
      %652 = vmatmul.mubr.f32.gmra.mrb[0].mxu0 %v454
      %v653 = vpop.f32.mrb[0].mxu0
      %v654 = vadd.f32 0.0, %v653
      %v655 = vpop.f32.mrb[0].mxu0
      %656 = vmatprep.mubr.f32.mxu0 0.0
      %657 = vmatmul.mubr.f32.gmra.mrb[0].mxu0 %v457
      %v658 = vpop.f32.mrb[0].mxu0
      %v659 = vadd.f32 0.0, %v658
      %v660 = vpop.f32.mrb[0].mxu0
      %661 = vmatprep.mubr.f32.mxu0 0.0
      %662 = vmatmul.mubr.f32.gmra.mrb[0].mxu0 %v460
      %v663 = vpop.f32.mrb[0].mxu0
      %v664 = vadd.f32 0.0, %v663
      %v665 = vpop.f32.mrb[0].mxu0
      %666 = vmatprep.mubr.f32.mxu0 0.0
      %667 = vmatmul.mubr.f32.gmra.mrb[0].mxu0 %v463
      %v668 = vpop.f32.mrb[0].mxu0
      %v669 = vadd.f32 0.0, %v668
      %v670 = vpop.f32.mrb[0].mxu0
      %671 = vmatprep.mubr.f32.mxu0 0.0
      %672 = vmatmul.mubr.f32.gmra.mrb[0].mxu0 %v466
      %v673 = vpop.f32.mrb[0].mxu0
      %v674 = vadd.f32 0.0, %v673
      %v675 = vpop.f32.mrb[0].mxu0
      %676 = vmatprep.mubr.f32.mxu0 0.0
      %677 = vmatmul.mubr.f32.gmra.mrb[0].mxu0 %v469
      %v678 = vpop.f32.mrb[0].mxu0
      %v679 = vadd.f32 0.0, %v678
      %v680 = vpop.f32.mrb[0].mxu0
      %681 = vmatprep.mubr.f32.mxu0 0.0
      %682 = vmatmul.mubr.f32.gmra.mrb[0].mxu0 %v472
      %v683 = vpop.f32.mrb[0].mxu0
      %v684 = vadd.f32 0.0, %v683
      %v685 = vpop.f32.mrb[0].mxu0
      %686 = vmatprep.mubr.f32.mxu0 0.0
      %687 = vmatmul.mubr.f32.gmra.mrb[0].mxu0 %v475
      %v688 = vpop.f32.mrb[0].mxu0
      %v689 = vadd.f32 0.0, %v688
      %v690 = vpop.f32.mrb[0].mxu0
      %691 = vmatprep.mubr.f32.mxu0 0.0
      %692 = vmatmul.mubr.f32.gmra.mrb[0].mxu0 %v478
      %v693 = vpop.f32.mrb[0].mxu0
      %v694 = vadd.f32 0.0, %v693
      %v695 = vpop.f32.mrb[0].mxu0
      %696 = vmatprep.mubr.f32.mxu0 0.0
      %697 = vmatmul.mubr.f32.gmra.mrb[0].mxu0 %v481
      %v698 = vpop.f32.mrb[0].mxu0
      %v699 = vadd.f32 0.0, %v698
      %v700 = vpop.f32.mrb[0].mxu0
      %701 = vmatprep.mubr.f32.mxu0 0.0
      %702 = vmatmul.mubr.f32.gmra.mrb[0].mxu0 %v484
      %v703 = vpop.f32.mrb[0].mxu0
      %v704 = vadd.f32 0.0, %v703
      %v705 = vpop.f32.mrb[0].mxu0
      %706 = vmatprep.mubr.f32.mxu0 0.0
      %707 = vmatmul.mubr.f32.gmra.mrb[0].mxu0 %v487
      %v708 = vpop.f32.mrb[0].mxu0
      %v709 = vadd.f32 0.0, %v708
      %v710 = vpop.f32.mrb[0].mxu0
      %711 = vmatprep.mubr.f32.mxu0 0.0
      %712 = vmatmul.mubr.f32.gmra.mrb[0].mxu0 %v490
      %v713 = vpop.f32.mrb[0].mxu0
      %v714 = vadd.f32 0.0, %v713
      %v715 = vpop.f32.mrb[0].mxu0
      %716 = vdwg.mxu0
      %vm717 = vcmask 195584
      %v719 = vsel %vm717, %v326, 0
      %v722 = vsel %vm717, %v327, 0
      %v725 = vsel %vm717, %v328, 0
      %v728 = vsel %vm717, %v329, 0
      %v731 = vsel %vm717, %v330, 0
      %v734 = vsel %vm717, %v331, 0
      %v737 = vsel %vm717, %v332, 0
      %v740 = vsel %vm717, %v333, 0
      %v743 = vsel %vm717, %v334, 0
      %v746 = vsel %vm717, %v335, 0
      %v749 = vsel %vm717, %v336, 0
      %v752 = vsel %vm717, %v337, 0
      %v755 = vsel %vm717, %v338, 0
      %v758 = vsel %vm717, %v339, 0
      %v761 = vsel %vm717, %v340, 0
      %v764 = vsel %vm717, %v341, 0
      %v767 = vsel %vm717, %v342, 0
      %v770 = vsel %vm717, %v343, 0
      %v773 = vsel %vm717, %v344, 0
      %v776 = vsel %vm717, %v345, 0
      %v779 = vsel %vm717, %v346, 0
      %v782 = vsel %vm717, %v347, 0
      %v785 = vsel %vm717, %v348, 0
      %v788 = vsel %vm717, %v349, 0
      %v791 = vsel %vm717, %v350, 0
      %v794 = vsel %vm717, %v351, 0
      %v797 = vsel %vm717, %v352, 0
      %v800 = vsel %vm717, %v353, 0
      %v803 = vsel %vm717, %v354, 0
      %v806 = vsel %vm717, %v355, 0
      %v809 = vsel %vm717, %v356, 0
      %v812 = vsel %vm717, %v357, 0
      %814 = vmatprep.subr.mxu0 0.0
      %815 = vmatpush1.msra.mxu0 %v358
      %816 = vmatprep.subr.mxu0 0.0
      %817 = vmatpush1.msra.mxu0 %v359
      %818 = vmatprep.subr.mxu0 0.0
      %819 = vmatpush1.msra.mxu0 %v360
      %820 = vmatprep.subr.mxu0 0.0
      %821 = vmatpush1.msra.mxu0 0.0
      %822 = vmatprep.subr.mxu0 0.0
      %823 = vmatpush1.msra.mxu0 0.0
      %824 = vmatprep.subr.mxu0 0.0
      %825 = vmatpush1.msra.mxu0 0.0
      %826 = vmatprep.subr.mxu0 0.0
      %827 = vmatpush1.msra.mxu0 0.0
      %828 = vmatprep.subr.mxu0 0.0
      %829 = vmatpush1.msra.mxu0 0.0
      %830 = vmatprep.subr.mxu0 0.0
      %831 = vmatpush1.msra.mxu0 0.0
      %832 = vmatprep.subr.mxu0 0.0
      %833 = vmatpush1.msra.mxu0 0.0
      %834 = vmatprep.subr.mxu0 0.0
      %835 = vmatpush1.msra.mxu0 0.0
      %836 = vmatprep.subr.mxu0 0.0
      %837 = vmatpush1.msra.mxu0 0.0
      %838 = vmatprep.subr.mxu0 0.0
      %839 = vmatpush1.msra.mxu0 0.0
      %840 = vmatprep.subr.mxu0 0.0
      %841 = vmatpush1.msra.mxu0 0.0
      %842 = vmatprep.subr.mxu0 0.0
      %843 = vmatpush1.msra.mxu0 0.0
      %844 = vmatprep.subr.mxu0 0.0
      %845 = vmatpush1.msra.mxu0 0.0
      %846 = vmatprep.subr.mxu0 0.0
      %847 = vmatpush1.msra.mxu0 0.0
      %848 = vmatprep.subr.mxu0 0.0
      %849 = vmatpush1.msra.mxu0 0.0
      %850 = vmatprep.subr.mxu0 0.0
      %851 = vmatpush1.msra.mxu0 0.0
      %852 = vmatprep.subr.mxu0 0.0
      %853 = vmatpush1.msra.mxu0 0.0
      %854 = vmatprep.subr.mxu0 0.0
      %855 = vmatpush1.msra.mxu0 0.0
      %856 = vmatprep.subr.mxu0 0.0
      %857 = vmatpush1.msra.mxu0 0.0
      %858 = vmatprep.subr.mxu0 0.0
      %859 = vmatpush1.msra.mxu0 0.0
      %860 = vmatprep.subr.mxu0 0.0
      %861 = vmatpush1.msra.mxu0 0.0
      %862 = vmatprep.subr.mxu0 0.0
      %863 = vmatpush1.msra.mxu0 0.0
      %864 = vmatprep.subr.mxu0 0.0
      %865 = vmatpush1.msra.mxu0 0.0
      %866 = vmatprep.subr.mxu0 0.0
      %867 = vmatpush1.msra.mxu0 0.0
      %868 = vmatprep.subr.mxu0 0.0
      %869 = vmatpush1.msra.mxu0 0.0
      %870 = vmatprep.subr.mxu0 0.0
      %871 = vmatpush1.msra.mxu0 0.0
      %872 = vmatprep.subr.mxu0 0.0
      %873 = vmatpush1.msra.mxu0 0.0
      %874 = vmatprep.subr.mxu0 0.0
      %875 = vmatpush1.msra.mxu0 0.0
      %876 = vmatprep.subr.mxu0 0.0
      %877 = vmatpush1.msra.mxu0 0.0
      %878 = vmatprep.mubr.f32.mxu0 0.0
      %879 = vmatmul.mubr.f32.gmra.mrb[0].mxu0 %v719
      %v880 = vpop.f32.mrb[0].mxu0
      %v881 = vadd.f32 %v559, %v880
      %v882 = vpop.f32.mrb[0].mxu0
      %883 = vmatprep.mubr.f32.mxu0 0.0
      %884 = vmatmul.mubr.f32.gmra.mrb[0].mxu0 %v722
      %v885 = vpop.f32.mrb[0].mxu0
      %v886 = vadd.f32 %v564, %v885
      %v887 = vpop.f32.mrb[0].mxu0
      %888 = vmatprep.mubr.f32.mxu0 0.0
      %889 = vmatmul.mubr.f32.gmra.mrb[0].mxu0 %v725
      %v890 = vpop.f32.mrb[0].mxu0
      %v891 = vadd.f32 %v569, %v890
      %v892 = vpop.f32.mrb[0].mxu0
      %893 = vmatprep.mubr.f32.mxu0 0.0
      %894 = vmatmul.mubr.f32.gmra.mrb[0].mxu0 %v728
      %v895 = vpop.f32.mrb[0].mxu0
      %v896 = vadd.f32 %v574, %v895
      %v897 = vpop.f32.mrb[0].mxu0
      %898 = vmatprep.mubr.f32.mxu0 0.0
      %899 = vmatmul.mubr.f32.gmra.mrb[0].mxu0 %v731
      %v900 = vpop.f32.mrb[0].mxu0
      %v901 = vadd.f32 %v579, %v900
      %v902 = vpop.f32.mrb[0].mxu0
      %903 = vmatprep.mubr.f32.mxu0 0.0
      %904 = vmatmul.mubr.f32.gmra.mrb[0].mxu0 %v734
      %v905 = vpop.f32.mrb[0].mxu0
      %v906 = vadd.f32 %v584, %v905
      %v907 = vpop.f32.mrb[0].mxu0
      %908 = vmatprep.mubr.f32.mxu0 0.0
      %909 = vmatmul.mubr.f32.gmra.mrb[0].mxu0 %v737
      %v910 = vpop.f32.mrb[0].mxu0
      %v911 = vadd.f32 %v589, %v910
      %v912 = vpop.f32.mrb[0].mxu0
      %913 = vmatprep.mubr.f32.mxu0 0.0
      %914 = vmatmul.mubr.f32.gmra.mrb[0].mxu0 %v740
      %v915 = vpop.f32.mrb[0].mxu0
      %v916 = vadd.f32 %v594, %v915
      %v917 = vpop.f32.mrb[0].mxu0
      %918 = vmatprep.mubr.f32.mxu0 0.0
      %919 = vmatmul.mubr.f32.gmra.mrb[0].mxu0 %v743
      %v920 = vpop.f32.mrb[0].mxu0
      %v921 = vadd.f32 %v599, %v920
      %v922 = vpop.f32.mrb[0].mxu0
      %923 = vmatprep.mubr.f32.mxu0 0.0
      %924 = vmatmul.mubr.f32.gmra.mrb[0].mxu0 %v746
      %v925 = vpop.f32.mrb[0].mxu0
      %v926 = vadd.f32 %v604, %v925
      %v927 = vpop.f32.mrb[0].mxu0
      %928 = vmatprep.mubr.f32.mxu0 0.0
      %929 = vmatmul.mubr.f32.gmra.mrb[0].mxu0 %v749
      %v930 = vpop.f32.mrb[0].mxu0
      %v931 = vadd.f32 %v609, %v930
      %v932 = vpop.f32.mrb[0].mxu0
      %933 = vmatprep.mubr.f32.mxu0 0.0
      %934 = vmatmul.mubr.f32.gmra.mrb[0].mxu0 %v752
      %v935 = vpop.f32.mrb[0].mxu0
      %v936 = vadd.f32 %v614, %v935
      %v937 = vpop.f32.mrb[0].mxu0
      %938 = vmatprep.mubr.f32.mxu0 0.0
      %939 = vmatmul.mubr.f32.gmra.mrb[0].mxu0 %v755
      %v940 = vpop.f32.mrb[0].mxu0
      %v941 = vadd.f32 %v619, %v940
      %v942 = vpop.f32.mrb[0].mxu0
      %943 = vmatprep.mubr.f32.mxu0 0.0
      %944 = vmatmul.mubr.f32.gmra.mrb[0].mxu0 %v758
      %v945 = vpop.f32.mrb[0].mxu0
      %v946 = vadd.f32 %v624, %v945
      %v947 = vpop.f32.mrb[0].mxu0
      %948 = vmatprep.mubr.f32.mxu0 0.0
      %949 = vmatmul.mubr.f32.gmra.mrb[0].mxu0 %v761
      %v950 = vpop.f32.mrb[0].mxu0
      %v951 = vadd.f32 %v629, %v950
      %v952 = vpop.f32.mrb[0].mxu0
      %953 = vmatprep.mubr.f32.mxu0 0.0
      %954 = vmatmul.mubr.f32.gmra.mrb[0].mxu0 %v764
      %v955 = vpop.f32.mrb[0].mxu0
      %v956 = vadd.f32 %v634, %v955
      %v957 = vpop.f32.mrb[0].mxu0
      %958 = vmatprep.mubr.f32.mxu0 0.0
      %959 = vmatmul.mubr.f32.gmra.mrb[0].mxu0 %v767
      %v960 = vpop.f32.mrb[0].mxu0
      %v961 = vadd.f32 %v639, %v960
      %v962 = vpop.f32.mrb[0].mxu0
      %963 = vmatprep.mubr.f32.mxu0 0.0
      %964 = vmatmul.mubr.f32.gmra.mrb[0].mxu0 %v770
      %v965 = vpop.f32.mrb[0].mxu0
      %v966 = vadd.f32 %v644, %v965
      %v967 = vpop.f32.mrb[0].mxu0
      %968 = vmatprep.mubr.f32.mxu0 0.0
      %969 = vmatmul.mubr.f32.gmra.mrb[0].mxu0 %v773
      %v970 = vpop.f32.mrb[0].mxu0
      %v971 = vadd.f32 %v649, %v970
      %v972 = vpop.f32.mrb[0].mxu0
      %973 = vmatprep.mubr.f32.mxu0 0.0
      %974 = vmatmul.mubr.f32.gmra.mrb[0].mxu0 %v776
      %v975 = vpop.f32.mrb[0].mxu0
      %v976 = vadd.f32 %v654, %v975
      %v977 = vpop.f32.mrb[0].mxu0
      %978 = vmatprep.mubr.f32.mxu0 0.0
      %979 = vmatmul.mubr.f32.gmra.mrb[0].mxu0 %v779
      %v980 = vpop.f32.mrb[0].mxu0
      %v981 = vadd.f32 %v659, %v980
      %v982 = vpop.f32.mrb[0].mxu0
      %983 = vmatprep.mubr.f32.mxu0 0.0
      %984 = vmatmul.mubr.f32.gmra.mrb[0].mxu0 %v782
      %v985 = vpop.f32.mrb[0].mxu0
      %v986 = vadd.f32 %v664, %v985
      %v987 = vpop.f32.mrb[0].mxu0
      %988 = vmatprep.mubr.f32.mxu0 0.0
      %989 = vmatmul.mubr.f32.gmra.mrb[0].mxu0 %v785
      %v990 = vpop.f32.mrb[0].mxu0
      %v991 = vadd.f32 %v669, %v990
      %v992 = vpop.f32.mrb[0].mxu0
      %993 = vmatprep.mubr.f32.mxu0 0.0
      %994 = vmatmul.mubr.f32.gmra.mrb[0].mxu0 %v788
      %v995 = vpop.f32.mrb[0].mxu0
      %v996 = vadd.f32 %v674, %v995
      %v997 = vpop.f32.mrb[0].mxu0
      %998 = vmatprep.mubr.f32.mxu0 0.0
      %999 = vmatmul.mubr.f32.gmra.mrb[0].mxu0 %v791
      %v1000 = vpop.f32.mrb[0].mxu0
      %v1001 = vadd.f32 %v679, %v1000
      %v1002 = vpop.f32.mrb[0].mxu0
      %1003 = vmatprep.mubr.f32.mxu0 0.0
      %1004 = vmatmul.mubr.f32.gmra.mrb[0].mxu0 %v794
      %v1005 = vpop.f32.mrb[0].mxu0
      %v1006 = vadd.f32 %v684, %v1005
      %v1007 = vpop.f32.mrb[0].mxu0
      %1008 = vmatprep.mubr.f32.mxu0 0.0
      %1009 = vmatmul.mubr.f32.gmra.mrb[0].mxu0 %v797
      %v1010 = vpop.f32.mrb[0].mxu0
      %v1011 = vadd.f32 %v689, %v1010
      %v1012 = vpop.f32.mrb[0].mxu0
      %1013 = vmatprep.mubr.f32.mxu0 0.0
      %1014 = vmatmul.mubr.f32.gmra.mrb[0].mxu0 %v800
      %v1015 = vpop.f32.mrb[0].mxu0
      %v1016 = vadd.f32 %v694, %v1015
      %v1017 = vpop.f32.mrb[0].mxu0
      %1018 = vmatprep.mubr.f32.mxu0 0.0
      %1019 = vmatmul.mubr.f32.gmra.mrb[0].mxu0 %v803
      %v1020 = vpop.f32.mrb[0].mxu0
      %v1021 = vadd.f32 %v699, %v1020
      %v1022 = vpop.f32.mrb[0].mxu0
      %1023 = vmatprep.mubr.f32.mxu0 0.0
      %1024 = vmatmul.mubr.f32.gmra.mrb[0].mxu0 %v806
      %v1025 = vpop.f32.mrb[0].mxu0
      %v1026 = vadd.f32 %v704, %v1025
      %v1027 = vpop.f32.mrb[0].mxu0
      %1028 = vmatprep.mubr.f32.mxu0 0.0
      %1029 = vmatmul.mubr.f32.gmra.mrb[0].mxu0 %v809
      %v1030 = vpop.f32.mrb[0].mxu0
      %v1031 = vadd.f32 %v709, %v1030
      %v1032 = vpop.f32.mrb[0].mxu0
      %1033 = vmatprep.mubr.f32.mxu0 0.0
      %1034 = vmatmul.mubr.f32.gmra.mrb[0].mxu0 %v812
      %v1035 = vpop.f32.mrb[0].mxu0
      %v1036 = vadd.f32 %v714, %v1035
      %v1037 = vpop.f32.mrb[0].mxu0
      %1038 = vdwg.mxu0
      %v1039 = vld [vmem:[%s318] sm:$0xff]
      %v1040 = vld [vmem:[%s318 + $0x8] sm:$0xff]
      %v1041 = vld [vmem:[%s318 + $0x10] sm:$0xff]
      %v1042 = vld [vmem:[%s318 + $0x18] sm:$0xff]
      %v1043 = vld [vmem:[%s318 + $0x20] sm:$0xff]
      %v1044 = vld [vmem:[%s318 + $0x28] sm:$0xff]
      %v1045 = vld [vmem:[%s318 + $0x30] sm:$0xff]
      %v1046 = vld [vmem:[%s318 + $0x38] sm:$0xff]
      %v1047 = vld [vmem:[%s318 + $0x40] sm:$0xff]
      %v1048 = vld [vmem:[%s318 + $0x48] sm:$0xff]
      %v1049 = vld [vmem:[%s318 + $0x50] sm:$0xff]
      %v1050 = vld [vmem:[%s318 + $0x58] sm:$0xff]
      %v1051 = vld [vmem:[%s318 + $0x60] sm:$0xff]
      %v1052 = vld [vmem:[%s318 + $0x68] sm:$0xff]
      %v1053 = vld [vmem:[%s318 + $0x70] sm:$0xff]
      %v1054 = vld [vmem:[%s318 + $0x78] sm:$0xff]
      %v1055 = vld [vmem:[%s318 + $0x80] sm:$0xff]
      %v1056 = vld [vmem:[%s318 + $0x88] sm:$0xff]
      %v1057 = vld [vmem:[%s318 + $0x90] sm:$0xff]
      %v1058 = vld [vmem:[%s318 + $0x98] sm:$0xff]
      %v1059 = vld [vmem:[%s318 + $0xa0] sm:$0xff]
      %v1060 = vld [vmem:[%s318 + $0xa8] sm:$0xff]
      %v1061 = vld [vmem:[%s318 + $0xb0] sm:$0xff]
      %v1062 = vld [vmem:[%s318 + $0xb8] sm:$0xff]
      %v1063 = vld [vmem:[%s318 + $0xc0] sm:$0xff]
      %v1064 = vld [vmem:[%s318 + $0xc8] sm:$0xff]
      %v1065 = vld [vmem:[%s318 + $0xd0] sm:$0xff]
      %v1066 = vld [vmem:[%s318 + $0xd8] sm:$0xff]
      %v1067 = vld [vmem:[%s318 + $0xe0] sm:$0xff]
      %v1068 = vld [vmem:[%s318 + $0xe8] sm:$0xff]
      %v1069 = vld [vmem:[%s318 + $0xf0] sm:$0xff]
      %v1070 = vld [vmem:[%s318 + $0xf8] sm:$0xff]
      %v1071 = vld [vmem:[%s5] sm:$0xff]
      %vm1072 = vcmask 64512
      %v1074 = vsel %vm1072, %v1039, 0
      %v1077 = vsel %vm1072, %v1040, 0
      %v1080 = vsel %vm1072, %v1041, 0
      %v1083 = vsel %vm1072, %v1042, 0
      %v1086 = vsel %vm1072, %v1043, 0
      %v1089 = vsel %vm1072, %v1044, 0
      %v1092 = vsel %vm1072, %v1045, 0
      %v1095 = vsel %vm1072, %v1046, 0
      %v1098 = vsel %vm1072, %v1047, 0
      %v1101 = vsel %vm1072, %v1048, 0
      %v1104 = vsel %vm1072, %v1049, 0
      %v1107 = vsel %vm1072, %v1050, 0
      %v1110 = vsel %vm1072, %v1051, 0
      %v1113 = vsel %vm1072, %v1052, 0
      %v1116 = vsel %vm1072, %v1053, 0
      %v1119 = vsel %vm1072, %v1054, 0
      %v1122 = vsel %vm1072, %v1055, 0
      %v1125 = vsel %vm1072, %v1056, 0
      %v1128 = vsel %vm1072, %v1057, 0
      %v1131 = vsel %vm1072, %v1058, 0
      %v1134 = vsel %vm1072, %v1059, 0
      %v1137 = vsel %vm1072, %v1060, 0
      %v1140 = vsel %vm1072, %v1061, 0
      %v1143 = vsel %vm1072, %v1062, 0
      %v1146 = vsel %vm1072, %v1063, 0
      %v1149 = vsel %vm1072, %v1064, 0
      %v1152 = vsel %vm1072, %v1065, 0
      %v1155 = vsel %vm1072, %v1066, 0
      %v1158 = vsel %vm1072, %v1067, 0
      %v1161 = vsel %vm1072, %v1068, 0
      %v1164 = vsel %vm1072, %v1069, 0
      %v1167 = vsel %vm1072, %v1070, 0
      %1169 = vmatprep.subr.mxu0 0.0
      %1170 = vmatpush1.msra.mxu0 %v1071
      %1171 = vmatprep.subr.mxu0 0.0
      %1172 = vmatpush1.msra.mxu0 0.0
      %1173 = vmatprep.subr.mxu0 0.0
      %1174 = vmatpush1.msra.mxu0 0.0
      %1175 = vmatprep.subr.mxu0 0.0
      %1176 = vmatpush1.msra.mxu0 0.0
      %1177 = vmatprep.subr.mxu0 0.0
      %1178 = vmatpush1.msra.mxu0 0.0
      %1179 = vmatprep.subr.mxu0 0.0
      %1180 = vmatpush1.msra.mxu0 0.0
      %1181 = vmatprep.subr.mxu0 0.0
      %1182 = vmatpush1.msra.mxu0 0.0
      %1183 = vmatprep.subr.mxu0 0.0
      %1184 = vmatpush1.msra.mxu0 0.0
      %1185 = vmatprep.subr.mxu0 0.0
      %1186 = vmatpush1.msra.mxu0 0.0
      %1187 = vmatprep.subr.mxu0 0.0
      %1188 = vmatpush1.msra.mxu0 0.0
      %1189 = vmatprep.subr.mxu0 0.0
      %1190 = vmatpush1.msra.mxu0 0.0
      %1191 = vmatprep.subr.mxu0 0.0
      %1192 = vmatpush1.msra.mxu0 0.0
      %1193 = vmatprep.subr.mxu0 0.0
      %1194 = vmatpush1.msra.mxu0 0.0
      %1195 = vmatprep.subr.mxu0 0.0
      %1196 = vmatpush1.msra.mxu0 0.0
      %1197 = vmatprep.subr.mxu0 0.0
      %1198 = vmatpush1.msra.mxu0 0.0
      %1199 = vmatprep.subr.mxu0 0.0
      %1200 = vmatpush1.msra.mxu0 0.0
      %1201 = vmatprep.subr.mxu0 0.0
      %1202 = vmatpush1.msra.mxu0 0.0
      %1203 = vmatprep.subr.mxu0 0.0
      %1204 = vmatpush1.msra.mxu0 0.0
      %1205 = vmatprep.subr.mxu0 0.0
      %1206 = vmatpush1.msra.mxu0 0.0
      %1207 = vmatprep.subr.mxu0 0.0
      %1208 = vmatpush1.msra.mxu0 0.0
      %1209 = vmatprep.subr.mxu0 0.0
      %1210 = vmatpush1.msra.mxu0 0.0
      %1211 = vmatprep.subr.mxu0 0.0
      %1212 = vmatpush1.msra.mxu0 0.0
      %1213 = vmatprep.subr.mxu0 0.0
      %1214 = vmatpush1.msra.mxu0 0.0
      %1215 = vmatprep.subr.mxu0 0.0
      %1216 = vmatpush1.msra.mxu0 0.0
      %1217 = vmatprep.subr.mxu0 0.0
      %1218 = vmatpush1.msra.mxu0 0.0
      %1219 = vmatprep.subr.mxu0 0.0
      %1220 = vmatpush1.msra.mxu0 0.0
      %1221 = vmatprep.subr.mxu0 0.0
      %1222 = vmatpush1.msra.mxu0 0.0
      %1223 = vmatprep.subr.mxu0 0.0
      %1224 = vmatpush1.msra.mxu0 0.0
      %1225 = vmatprep.subr.mxu0 0.0
      %1226 = vmatpush1.msra.mxu0 0.0
      %1227 = vmatprep.subr.mxu0 0.0
      %1228 = vmatpush1.msra.mxu0 0.0
      %1229 = vmatprep.subr.mxu0 0.0
      %1230 = vmatpush1.msra.mxu0 0.0
      %1231 = vmatprep.subr.mxu0 0.0
      %1232 = vmatpush1.msra.mxu0 0.0
      %1233 = vmatprep.mubr.f32.mxu0 0.0
      %1234 = vmatmul.mubr.f32.gmra.mrb[0].mxu0 %v1074
      %v1235 = vpop.f32.mrb[0].mxu0
      %v1236 = vadd.f32 0.0, %v1235
      %v1237 = vpop.f32.mrb[0].mxu0
      %1238 = vmatprep.mubr.f32.mxu0 0.0
      %1239 = vmatmul.mubr.f32.gmra.mrb[0].mxu0 %v1077
      %v1240 = vpop.f32.mrb[0].mxu0
      %v1241 = vadd.f32 0.0, %v1240
      %v1242 = vpop.f32.mrb[0].mxu0
      %1243 = vmatprep.mubr.f32.mxu0 0.0
      %1244 = vmatmul.mubr.f32.gmra.mrb[0].mxu0 %v1080
      %v1245 = vpop.f32.mrb[0].mxu0
      %v1246 = vadd.f32 0.0, %v1245
      %v1247 = vpop.f32.mrb[0].mxu0
      %1248 = vmatprep.mubr.f32.mxu0 0.0
      %1249 = vmatmul.mubr.f32.gmra.mrb[0].mxu0 %v1083
      %v1250 = vpop.f32.mrb[0].mxu0
      %v1251 = vadd.f32 0.0, %v1250
      %v1252 = vpop.f32.mrb[0].mxu0
      %1253 = vmatprep.mubr.f32.mxu0 0.0
      %1254 = vmatmul.mubr.f32.gmra.mrb[0].mxu0 %v1086
      %v1255 = vpop.f32.mrb[0].mxu0
      %v1256 = vadd.f32 0.0, %v1255
      %v1257 = vpop.f32.mrb[0].mxu0
      %1258 = vmatprep.mubr.f32.mxu0 0.0
      %1259 = vmatmul.mubr.f32.gmra.mrb[0].mxu0 %v1089
      %v1260 = vpop.f32.mrb[0].mxu0
      %v1261 = vadd.f32 0.0, %v1260
      %v1262 = vpop.f32.mrb[0].mxu0
      %1263 = vmatprep.mubr.f32.mxu0 0.0
      %1264 = vmatmul.mubr.f32.gmra.mrb[0].mxu0 %v1092
      %v1265 = vpop.f32.mrb[0].mxu0
      %v1266 = vadd.f32 0.0, %v1265
      %v1267 = vpop.f32.mrb[0].mxu0
      %1268 = vmatprep.mubr.f32.mxu0 0.0
      %1269 = vmatmul.mubr.f32.gmra.mrb[0].mxu0 %v1095
      %v1270 = vpop.f32.mrb[0].mxu0
      %v1271 = vadd.f32 0.0, %v1270
      %v1272 = vpop.f32.mrb[0].mxu0
      %1273 = vmatprep.mubr.f32.mxu0 0.0
      %1274 = vmatmul.mubr.f32.gmra.mrb[0].mxu0 %v1098
      %v1275 = vpop.f32.mrb[0].mxu0
      %v1276 = vadd.f32 0.0, %v1275
      %v1277 = vpop.f32.mrb[0].mxu0
      %1278 = vmatprep.mubr.f32.mxu0 0.0
      %1279 = vmatmul.mubr.f32.gmra.mrb[0].mxu0 %v1101
      %v1280 = vpop.f32.mrb[0].mxu0
      %v1281 = vadd.f32 0.0, %v1280
      %v1282 = vpop.f32.mrb[0].mxu0
      %1283 = vmatprep.mubr.f32.mxu0 0.0
      %1284 = vmatmul.mubr.f32.gmra.mrb[0].mxu0 %v1104
      %v1285 = vpop.f32.mrb[0].mxu0
      %v1286 = vadd.f32 0.0, %v1285
      %v1287 = vpop.f32.mrb[0].mxu0
      %1288 = vmatprep.mubr.f32.mxu0 0.0
      %1289 = vmatmul.mubr.f32.gmra.mrb[0].mxu0 %v1107
      %v1290 = vpop.f32.mrb[0].mxu0
      %v1291 = vadd.f32 0.0, %v1290
      %v1292 = vpop.f32.mrb[0].mxu0
      %1293 = vmatprep.mubr.f32.mxu0 0.0
      %1294 = vmatmul.mubr.f32.gmra.mrb[0].mxu0 %v1110
      %v1295 = vpop.f32.mrb[0].mxu0
      %v1296 = vadd.f32 0.0, %v1295
      %v1297 = vpop.f32.mrb[0].mxu0
      %1298 = vmatprep.mubr.f32.mxu0 0.0
      %1299 = vmatmul.mubr.f32.gmra.mrb[0].mxu0 %v1113
      %v1300 = vpop.f32.mrb[0].mxu0
      %v1301 = vadd.f32 0.0, %v1300
      %v1302 = vpop.f32.mrb[0].mxu0
      %1303 = vmatprep.mubr.f32.mxu0 0.0
      %1304 = vmatmul.mubr.f32.gmra.mrb[0].mxu0 %v1116
      %v1305 = vpop.f32.mrb[0].mxu0
      %v1306 = vadd.f32 0.0, %v1305
      %v1307 = vpop.f32.mrb[0].mxu0
      %1308 = vmatprep.mubr.f32.mxu0 0.0
      %1309 = vmatmul.mubr.f32.gmra.mrb[0].mxu0 %v1119
      %v1310 = vpop.f32.mrb[0].mxu0
      %v1311 = vadd.f32 0.0, %v1310
      %v1312 = vpop.f32.mrb[0].mxu0
      %1313 = vmatprep.mubr.f32.mxu0 0.0
      %1314 = vmatmul.mubr.f32.gmra.mrb[0].mxu0 %v1122
      %v1315 = vpop.f32.mrb[0].mxu0
      %v1316 = vadd.f32 0.0, %v1315
      %v1317 = vpop.f32.mrb[0].mxu0
      %1318 = vmatprep.mubr.f32.mxu0 0.0
      %1319 = vmatmul.mubr.f32.gmra.mrb[0].mxu0 %v1125
      %v1320 = vpop.f32.mrb[0].mxu0
      %v1321 = vadd.f32 0.0, %v1320
      %v1322 = vpop.f32.mrb[0].mxu0
      %1323 = vmatprep.mubr.f32.mxu0 0.0
      %1324 = vmatmul.mubr.f32.gmra.mrb[0].mxu0 %v1128
      %v1325 = vpop.f32.mrb[0].mxu0
      %v1326 = vadd.f32 0.0, %v1325
      %v1327 = vpop.f32.mrb[0].mxu0
      %1328 = vmatprep.mubr.f32.mxu0 0.0
      %1329 = vmatmul.mubr.f32.gmra.mrb[0].mxu0 %v1131
      %v1330 = vpop.f32.mrb[0].mxu0
      %v1331 = vadd.f32 0.0, %v1330
      %v1332 = vpop.f32.mrb[0].mxu0
      %1333 = vmatprep.mubr.f32.mxu0 0.0
      %1334 = vmatmul.mubr.f32.gmra.mrb[0].mxu0 %v1134
      %v1335 = vpop.f32.mrb[0].mxu0
      %v1336 = vadd.f32 0.0, %v1335
      %v1337 = vpop.f32.mrb[0].mxu0
      %1338 = vmatprep.mubr.f32.mxu0 0.0
      %1339 = vmatmul.mubr.f32.gmra.mrb[0].mxu0 %v1137
      %v1340 = vpop.f32.mrb[0].mxu0
      %v1341 = vadd.f32 0.0, %v1340
      %v1342 = vpop.f32.mrb[0].mxu0
      %1343 = vmatprep.mubr.f32.mxu0 0.0
      %1344 = vmatmul.mubr.f32.gmra.mrb[0].mxu0 %v1140
      %v1345 = vpop.f32.mrb[0].mxu0
      %v1346 = vadd.f32 0.0, %v1345
      %v1347 = vpop.f32.mrb[0].mxu0
      %1348 = vmatprep.mubr.f32.mxu0 0.0
      %1349 = vmatmul.mubr.f32.gmra.mrb[0].mxu0 %v1143
      %v1350 = vpop.f32.mrb[0].mxu0
      %v1351 = vadd.f32 0.0, %v1350
      %v1352 = vpop.f32.mrb[0].mxu0
      %1353 = vmatprep.mubr.f32.mxu0 0.0
      %1354 = vmatmul.mubr.f32.gmra.mrb[0].mxu0 %v1146
      %v1355 = vpop.f32.mrb[0].mxu0
      %v1356 = vadd.f32 0.0, %v1355
      %v1357 = vpop.f32.mrb[0].mxu0
      %1358 = vmatprep.mubr.f32.mxu0 0.0
      %1359 = vmatmul.mubr.f32.gmra.mrb[0].mxu0 %v1149
      %v1360 = vpop.f32.mrb[0].mxu0
      %v1361 = vadd.f32 0.0, %v1360
      %v1362 = vpop.f32.mrb[0].mxu0
      %1363 = vmatprep.mubr.f32.mxu0 0.0
      %1364 = vmatmul.mubr.f32.gmra.mrb[0].mxu0 %v1152
      %v1365 = vpop.f32.mrb[0].mxu0
      %v1366 = vadd.f32 0.0, %v1365
      %v1367 = vpop.f32.mrb[0].mxu0
      %1368 = vmatprep.mubr.f32.mxu0 0.0
      %1369 = vmatmul.mubr.f32.gmra.mrb[0].mxu0 %v1155
      %v1370 = vpop.f32.mrb[0].mxu0
      %v1371 = vadd.f32 0.0, %v1370
      %v1372 = vpop.f32.mrb[0].mxu0
      %1373 = vmatprep.mubr.f32.mxu0 0.0
      %1374 = vmatmul.mubr.f32.gmra.mrb[0].mxu0 %v1158
      %v1375 = vpop.f32.mrb[0].mxu0
      %v1376 = vadd.f32 0.0, %v1375
      %v1377 = vpop.f32.mrb[0].mxu0
      %1378 = vmatprep.mubr.f32.mxu0 0.0
      %1379 = vmatmul.mubr.f32.gmra.mrb[0].mxu0 %v1161
      %v1380 = vpop.f32.mrb[0].mxu0
      %v1381 = vadd.f32 0.0, %v1380
      %v1382 = vpop.f32.mrb[0].mxu0
      %1383 = vmatprep.mubr.f32.mxu0 0.0
      %1384 = vmatmul.mubr.f32.gmra.mrb[0].mxu0 %v1164
      %v1385 = vpop.f32.mrb[0].mxu0
      %v1386 = vadd.f32 0.0, %v1385
      %v1387 = vpop.f32.mrb[0].mxu0
      %1388 = vmatprep.mubr.f32.mxu0 0.0
      %1389 = vmatmul.mubr.f32.gmra.mrb[0].mxu0 %v1167
      %v1390 = vpop.f32.mrb[0].mxu0
      %v1391 = vadd.f32 0.0, %v1390
      %v1392 = vpop.f32.mrb[0].mxu0
      %1393 = vdwg.mxu0
      %v1394 = vadd.f32 %v881, %v1236
      %v1395 = vadd.f32 %v886, %v1241
      %v1396 = vadd.f32 %v891, %v1246
      %v1397 = vadd.f32 %v896, %v1251
      %v1398 = vadd.f32 %v901, %v1256
      %v1399 = vadd.f32 %v906, %v1261
      %v1400 = vadd.f32 %v911, %v1266
      %v1401 = vadd.f32 %v916, %v1271
      %v1402 = vadd.f32 %v921, %v1276
      %v1403 = vadd.f32 %v926, %v1281
      %v1404 = vadd.f32 %v931, %v1286
      %v1405 = vadd.f32 %v936, %v1291
      %v1406 = vadd.f32 %v941, %v1296
      %v1407 = vadd.f32 %v946, %v1301
      %v1408 = vadd.f32 %v951, %v1306
      %v1409 = vadd.f32 %v956, %v1311
      %v1410 = vadd.f32 %v961, %v1316
      %v1411 = vadd.f32 %v966, %v1321
      %v1412 = vadd.f32 %v971, %v1326
      %v1413 = vadd.f32 %v976, %v1331
      %v1414 = vadd.f32 %v981, %v1336
      %v1415 = vadd.f32 %v986, %v1341
      %v1416 = vadd.f32 %v991, %v1346
      %v1417 = vadd.f32 %v996, %v1351
      %v1418 = vadd.f32 %v1001, %v1356
      %v1419 = vadd.f32 %v1006, %v1361
      %v1420 = vadd.f32 %v1011, %v1366
      %v1421 = vadd.f32 %v1016, %v1371
      %v1422 = vadd.f32 %v1021, %v1376
      %v1423 = vadd.f32 %v1026, %v1381
      %v1424 = vadd.f32 %v1031, %v1386
      %v1425 = vadd.f32 %v1036, %v1391
      %v1426 = vld [vmem:[%s6] sm:$0x1]
      %v1428 = vlaneseq
      %v1429 = vshrl.u32 %v1428, 7
      %v1430 = vsub.s32 0, %v1429
      %v1431 = vrot.slane %v1426, %v1430
      %v1433 = vadd.f32 %v1394, %v1431
      %v1434 = vadd.f32 %v1395, %v1431
      %v1435 = vadd.f32 %v1396, %v1431
      %v1436 = vadd.f32 %v1397, %v1431
      %v1437 = vadd.f32 %v1398, %v1431
      %v1438 = vadd.f32 %v1399, %v1431
      %v1439 = vadd.f32 %v1400, %v1431
      %v1440 = vadd.f32 %v1401, %v1431
      %v1441 = vadd.f32 %v1402, %v1431
      %v1442 = vadd.f32 %v1403, %v1431
      %v1443 = vadd.f32 %v1404, %v1431
      %v1444 = vadd.f32 %v1405, %v1431
      %v1445 = vadd.f32 %v1406, %v1431
      %v1446 = vadd.f32 %v1407, %v1431
      %v1447 = vadd.f32 %v1408, %v1431
      %v1448 = vadd.f32 %v1409, %v1431
      %v1449 = vadd.f32 %v1410, %v1431
      %v1450 = vadd.f32 %v1411, %v1431
      %v1451 = vadd.f32 %v1412, %v1431
      %v1452 = vadd.f32 %v1413, %v1431
      %v1453 = vadd.f32 %v1414, %v1431
      %v1454 = vadd.f32 %v1415, %v1431
      %v1455 = vadd.f32 %v1416, %v1431
      %v1456 = vadd.f32 %v1417, %v1431
      %v1457 = vadd.f32 %v1418, %v1431
      %v1458 = vadd.f32 %v1419, %v1431
      %v1459 = vadd.f32 %v1420, %v1431
      %v1460 = vadd.f32 %v1421, %v1431
      %v1461 = vadd.f32 %v1422, %v1431
      %v1462 = vadd.f32 %v1423, %v1431
      %v1463 = vadd.f32 %v1424, %v1431
      %v1464 = vadd.f32 %v1425, %v1431
      %v1465 = vmax.f32 %v1433, 0.0
      %v1466 = vmax.f32 %v1434, 0.0
      %v1467 = vmax.f32 %v1435, 0.0
      %v1468 = vmax.f32 %v1436, 0.0
      %v1469 = vmax.f32 %v1437, 0.0
      %v1470 = vmax.f32 %v1438, 0.0
      %v1471 = vmax.f32 %v1439, 0.0
      %v1472 = vmax.f32 %v1440, 0.0
      %v1473 = vmax.f32 %v1441, 0.0
      %v1474 = vmax.f32 %v1442, 0.0
      %v1475 = vmax.f32 %v1443, 0.0
      %v1476 = vmax.f32 %v1444, 0.0
      %v1477 = vmax.f32 %v1445, 0.0
      %v1478 = vmax.f32 %v1446, 0.0
      %v1479 = vmax.f32 %v1447, 0.0
      %v1480 = vmax.f32 %v1448, 0.0
      %v1481 = vmax.f32 %v1449, 0.0
      %v1482 = vmax.f32 %v1450, 0.0
      %v1483 = vmax.f32 %v1451, 0.0
      %v1484 = vmax.f32 %v1452, 0.0
      %v1485 = vmax.f32 %v1453, 0.0
      %v1486 = vmax.f32 %v1454, 0.0
      %v1487 = vmax.f32 %v1455, 0.0
      %v1488 = vmax.f32 %v1456, 0.0
      %v1489 = vmax.f32 %v1457, 0.0
      %v1490 = vmax.f32 %v1458, 0.0
      %v1491 = vmax.f32 %v1459, 0.0
      %v1492 = vmax.f32 %v1460, 0.0
      %v1493 = vmax.f32 %v1461, 0.0
      %v1494 = vmax.f32 %v1462, 0.0
      %v1495 = vmax.f32 %v1463, 0.0
      %v1496 = vmax.f32 %v1464, 0.0
      %vm1497 = vcmask 523264
      %1498 = vst.msk [vmem:[%s324] sm:$0xff] %vm1497, %v1465
      %1499 = vst.msk [vmem:[%s324 + $0x8] sm:$0xff] %vm1497, %v1466
      %1500 = vst.msk [vmem:[%s324 + $0x10] sm:$0xff] %vm1497, %v1467
      %1501 = vst.msk [vmem:[%s324 + $0x18] sm:$0xff] %vm1497, %v1468
      %1502 = vst.msk [vmem:[%s324 + $0x20] sm:$0xff] %vm1497, %v1469
      %1503 = vst.msk [vmem:[%s324 + $0x28] sm:$0xff] %vm1497, %v1470
      %1504 = vst.msk [vmem:[%s324 + $0x30] sm:$0xff] %vm1497, %v1471
      %1505 = vst.msk [vmem:[%s324 + $0x38] sm:$0xff] %vm1497, %v1472
      %1506 = vst.msk [vmem:[%s324 + $0x40] sm:$0xff] %vm1497, %v1473
      %1507 = vst.msk [vmem:[%s324 + $0x48] sm:$0xff] %vm1497, %v1474
      %1508 = vst.msk [vmem:[%s324 + $0x50] sm:$0xff] %vm1497, %v1475
      %1509 = vst.msk [vmem:[%s324 + $0x58] sm:$0xff] %vm1497, %v1476
      %1510 = vst.msk [vmem:[%s324 + $0x60] sm:$0xff] %vm1497, %v1477
      %1511 = vst.msk [vmem:[%s324 + $0x68] sm:$0xff] %vm1497, %v1478
      %1512 = vst.msk [vmem:[%s324 + $0x70] sm:$0xff] %vm1497, %v1479
      %1513 = vst.msk [vmem:[%s324 + $0x78] sm:$0xff] %vm1497, %v1480
      %1514 = vst.msk [vmem:[%s324 + $0x80] sm:$0xff] %vm1497, %v1481
      %1515 = vst.msk [vmem:[%s324 + $0x88] sm:$0xff] %vm1497, %v1482
      %1516 = vst.msk [vmem:[%s324 + $0x90] sm:$0xff] %vm1497, %v1483
      %1517 = vst.msk [vmem:[%s324 + $0x98] sm:$0xff] %vm1497, %v1484
      %1518 = vst.msk [vmem:[%s324 + $0xa0] sm:$0xff] %vm1497, %v1485
      %1519 = vst.msk [vmem:[%s324 + $0xa8] sm:$0xff] %vm1497, %v1486
      %1520 = vst.msk [vmem:[%s324 + $0xb0] sm:$0xff] %vm1497, %v1487
      %1521 = vst.msk [vmem:[%s324 + $0xb8] sm:$0xff] %vm1497, %v1488
      %1522 = vst.msk [vmem:[%s324 + $0xc0] sm:$0xff] %vm1497, %v1489
      %1523 = vst.msk [vmem:[%s324 + $0xc8] sm:$0xff] %vm1497, %v1490
      %1524 = vst.msk [vmem:[%s324 + $0xd0] sm:$0xff] %vm1497, %v1491
      %1525 = vst.msk [vmem:[%s324 + $0xd8] sm:$0xff] %vm1497, %v1492
      %1526 = vst.msk [vmem:[%s324 + $0xe0] sm:$0xff] %vm1497, %v1493
      %1527 = vst.msk [vmem:[%s324 + $0xe8] sm:$0xff] %vm1497, %v1494
      %1528 = vst.msk [vmem:[%s324 + $0xf0] sm:$0xff] %vm1497, %v1495
      %1529 = vst.msk [vmem:[%s324 + $0xf8] sm:$0xff] %vm1497, %v1496
      %s1530 = smul.u32 32, %s18
      %p1531 = scmp.lt.s32.totalorder %s1530, 63
      %s1532 = scalar_select %p1531, %s1530, 63
      %s1533 = smul.addr %s1532, 8
      %s1534 = scalar_lea.vmem %s7, %s1533
      // Predicated region
      $region49: #{tpu_custom_call.1} parent=47 // pred_check
        %p1535 = pneg %p198
      $region50: #{tpu_custom_call.1} parent=47 // pred_check_branch
        %1537 = sbr.rel (%p1535) target = $region52
      $region51: #{tpu_custom_call.1} parent=47 // pred_region
        %s1538 = smul.u32 32, %s18
      $region52: #{tpu_custom_call.1} parent=47 // pred_fallthru
        _
    $region48: #{tpu_custom_call.1} parent=5 // pred_fallthru
      _
    %p1539 = scmp.le.s32.totalorder 2, %s13
    // Predicated region
    $region53: #{tpu_custom_call.1} parent=5 // pred_check
      %p1540 = pneg %p1539
    $region54: #{tpu_custom_call.1} parent=5 // pred_check_branch
      %1542 = sbr.rel (%p1540) target = $region56
    $region55: #{tpu_custom_call.1} parent=5 // pred_region
      %s1543 = ssub.s32 %s13, 2
      // Predicated region
      $region57: #{tpu_custom_call.1} parent=55 // pred_check
        %p1544 = pneg %p204
      $region58: #{tpu_custom_call.1} parent=55 // pred_check_branch
        %1546 = sbr.rel (%p1544) target = $region60
      $region59: #{tpu_custom_call.1} parent=55 // pred_region
        %s1547 = smul.u32 32, %s19
        %p1548 = scmp.lt.s32.totalorder %s1547, 63
        %s1549 = scalar_select %p1548, %s1547, 63
        %s1550 = smul.addr %s1549, 8
        %s1551 = scalar_lea.vmem %s7, %s1550
      $region60: #{tpu_custom_call.1} parent=55 // pred_fallthru
        _
    $region56: #{tpu_custom_call.1} parent=5 // pred_fallthru
      _
  $region6: #{tpu_custom_call.1} parent=0 // loop_footer
    %s17 = sadd.s32 1, %s13
  $region7: #{tpu_custom_call.1} parent=0 // loop_footer_branch
    %12 = sbr.rel target = $region3
  $region8: #{tpu_custom_call.1} parent=0 // loop_exit
    _

</llo_original>
